<compile_context>
chip_gen: v7x
topology: tpu7x:2x2x1
jax: 0.10.0
libtpu: 0.0.40
codegen_flags: <defaults>
</compile_context>

<pallas_src>
import math

import jax
import jax.numpy as jnp
from jax.experimental import pallas as pl
from jax.experimental.pallas import tpu as pltpu

NEG_SLOPE = 0.2  # nn.LeakyReLU(negative_slope=0.2)


def _ngcf_kernel(mat_ref, featk_ref, feati_ref,      # inputs (VMEM tiles)
                 w1_ref, b1_ref, w2_ref, b2_ref,
                 out_ref, acc_ref):                   # output + scratch
    k = pl.program_id(1)

    @pl.when(k == 0)
    def _():
        acc_ref[...] = jnp.zeros_like(acc_ref)

    # Aggregation: bf16 x bf16 MXU pass, fp32 accumulation in VMEM scratch.
    acc_ref[...] += jnp.dot(mat_ref[...], featk_ref[...],
                            preferred_element_type=jnp.float32)

    # On the last K step the aggregated row-block is complete: apply the two
    # Linear layers + LeakyReLU + sum while it is still resident in VMEM.
    @pl.when(k == pl.num_programs(1) - 1)
    def _():
        agg = acc_ref[...]                            # (tile_m, Din) fp32
        feat = feati_ref[...]                         # (tile_m, Din) fp32
        p1 = jnp.dot(agg, w1_ref[...],
                     preferred_element_type=jnp.float32) + b1_ref[...]
        p2 = jnp.dot(agg * feat, w2_ref[...],
                     preferred_element_type=jnp.float32) + b2_ref[...]
        p1 = jnp.where(p1 >= 0, p1, NEG_SLOPE * p1)
        p2 = jnp.where(p2 >= 0, p2, NEG_SLOPE * p2)
        out_ref[...] = (p1 + p2).astype(out_ref.dtype)


def _round_up(x, m):
    return ((x + m - 1) // m) * m


def ngcf_conv(mat, node_feat, w1t, b1, w2t, b2, *, tile_m=512, tile_k=256):
    """Fused NGCF layer: LeakyReLU((mat@x)@W1+b1) + LeakyReLU(((mat@x)*x)@W2+b2).

    mat:       (N, N) normalized adjacency (dense storage).
    node_feat: (N, Din)
    w1t, w2t:  (Din, Dout)  -- already transposed (torch Linear stores (Dout, Din)).
    b1, b2:    (Dout,)
    Fully traceable (jax.jit-compatible): all tiling decisions use static shapes.
    """
    N, K = mat.shape
    assert N == K, "NGCF adjacency must be square (agg * node_feat requires it)"
    Din = node_feat.shape[1]
    Dout = w1t.shape[1]
    out_dtype = node_feat.dtype

    # ---- lane-dense feature dims: pad Din/Dout to multiples of 128 ----------
    Din_p = _round_up(Din, 128)
    Dout_p = _round_up(Dout, 128)
    if Din_p != Din:
        node_feat = jnp.pad(node_feat, ((0, 0), (0, Din_p - Din)))
        w1t = jnp.pad(w1t, ((0, Din_p - Din), (0, 0)))
        w2t = jnp.pad(w2t, ((0, Din_p - Din), (0, 0)))
    if Dout_p != Dout:
        w1t = jnp.pad(w1t, ((0, 0), (0, Dout_p - Dout)))
        w2t = jnp.pad(w2t, ((0, 0), (0, Dout_p - Dout)))
        b1 = jnp.pad(b1, (0, Dout_p - Dout))
        b2 = jnp.pad(b2, (0, Dout_p - Dout))
    b1 = b1.reshape(1, Dout_p)
    b2 = b2.reshape(1, Dout_p)

    # ---- tile selection ------------------------------------------------------
    # K tile fixed (MXU-friendly, multiple of 128); pad N to a multiple of it.
    tile_k = min(tile_k, _round_up(N, 128))
    Np = _round_up(N, tile_k)
    # Row tile: largest multiple-of-128 divisor of Np that is <= the requested
    # tile_m and <= Np//2 (so the "parallel" row axis has >= 2 blocks and both
    # v7x TensorCores get work). Falls back to 128 for tiny graphs.
    cap = min(tile_m, max(128, Np // 2))
    tile_m = 128
    for cand in range(128, cap + 1, 128):
        if Np % cand == 0:
            tile_m = cand

    if Np != N:  # zero rows/cols are inert for every op in the layer
        mat = jnp.pad(mat, ((0, Np - N), (0, Np - N)))
        node_feat = jnp.pad(node_feat, ((0, Np - N), (0, 0)))

    nbm = Np // tile_m
    nbk = Np // tile_k

    # bf16 operands for the bandwidth/MXU-heavy aggregation; fp32 elsewhere.
    mat_bf = mat.astype(jnp.bfloat16)
    featk_bf = node_feat.astype(jnp.bfloat16)
    feati = node_feat.astype(jnp.float32)
    w1t = w1t.astype(jnp.float32)
    w2t = w2t.astype(jnp.float32)
    b1 = b1.astype(jnp.float32)
    b2 = b2.astype(jnp.float32)

    cost = pl.CostEstimate(
        flops=2 * Np * Np * Din_p + 4 * Np * Din_p * Dout_p + 4 * Np * Dout_p,
        transcendentals=0,
        bytes_accessed=(2 * Np * Np                 # bf16 adjacency (streamed once)
                        + 2 * nbm * Np * Din_p      # bf16 feat re-streamed per row-block
                        + 4 * Np * Din_p            # fp32 feat (row-aligned, once)
                        + 8 * (Din_p * Dout_p + Dout_p)
                        + 4 * Np * Dout_p),         # fp32 output
    )

    grid_spec = pltpu.PrefetchScalarGridSpec(
        num_scalar_prefetch=0,
        grid=(nbm, nbk),
        in_specs=[
            # adjacency block: row-block i, K-block k
            pl.BlockSpec((tile_m, tile_k), lambda i, k: (i, k)),
            # features gathered along K for the aggregation matmul (bf16)
            pl.BlockSpec((tile_k, Din_p), lambda i, k: (k, 0)),
            # features aligned with the output row-block, for agg * feat (fp32)
            pl.BlockSpec((tile_m, Din_p), lambda i, k: (i, 0)),
            pl.BlockSpec((Din_p, Dout_p), lambda i, k: (0, 0)),
            pl.BlockSpec((1, Dout_p), lambda i, k: (0, 0)),
            pl.BlockSpec((Din_p, Dout_p), lambda i, k: (0, 0)),
            pl.BlockSpec((1, Dout_p), lambda i, k: (0, 0)),
        ],
        out_specs=pl.BlockSpec((tile_m, Dout_p), lambda i, k: (i, 0)),
        scratch_shapes=[pltpu.VMEM((tile_m, Din_p), jnp.float32)],
    )

    out = pl.pallas_call(
        _ngcf_kernel,
        out_shape=jax.ShapeDtypeStruct((Np, Dout_p), out_dtype),
        grid_spec=grid_spec,
        compiler_params=pltpu.CompilerParams(
            dimension_semantics=("parallel", "arbitrary"),
            vmem_limit_bytes=32 * 1024 * 1024,
        ),
        cost_estimate=cost,
    )(mat_bf, featk_bf, feati, w1t, b1, w2t, b2)

    return out[:N, :Dout]


if __name__ == "__main__":
    key = jax.random.PRNGKey(0)
    k_vals, k_mask, k_feat, k_w1, k_b1, k_w2, k_b2 = jax.random.split(key, 7)

    # Small graph: 384 nodes (not a tile multiple -> exercises padding + 2x2 grid),
    # 128-dim input embeddings, 128-dim output embeddings.
    num_nodes, in_features, out_features = 384, 128, 128

    # Sparse-ish normalized adjacency (~5% density), stored densely.
    vals = jax.random.uniform(k_vals, (num_nodes, num_nodes), dtype=jnp.float32)
    mask = jax.random.uniform(k_mask, (num_nodes, num_nodes)) < 0.05
    mat = jnp.where(mask, vals, 0.0).astype(jnp.float32)

    node_feat = jax.random.normal(k_feat, (num_nodes, in_features), dtype=jnp.float32)

    # Xavier-uniform-scaled weights (already transposed to (Din, Dout)).
    limit = (6.0 / (in_features + out_features)) ** 0.5
    w1t = jax.random.uniform(k_w1, (in_features, out_features),
                             minval=-limit, maxval=limit, dtype=jnp.float32)
    w2t = jax.random.uniform(k_w2, (in_features, out_features),
                             minval=-limit, maxval=limit, dtype=jnp.float32)
    b1 = jax.random.uniform(k_b1, (out_features,), minval=-0.1, maxval=0.1,
                            dtype=jnp.float32)
    b2 = jax.random.uniform(k_b2, (out_features,), minval=-0.1, maxval=0.1,
                            dtype=jnp.float32)

    ngcf = jax.jit(ngcf_conv)   # wrapper is fully traceable now
    out = ngcf(mat, node_feat, w1t, b1, w2t, b2)
    jax.block_until_ready(out)

    # Plain-JAX reference of the (eval-mode) NgcfConv forward. The aggregation
    # reference mirrors the kernel's bf16-input / fp32-accumulate matmul.
    def leaky(x):
        return jnp.where(x >= 0, x, NEG_SLOPE * x)

    agg = (mat.astype(jnp.bfloat16).astype(jnp.float32)
           @ node_feat.astype(jnp.bfloat16).astype(jnp.float32))
    ref = leaky(agg @ w1t + b1) + leaky((agg * node_feat) @ w2t + b2)

    assert out.shape == (num_nodes, out_features)
    err = float(jnp.max(jnp.abs(out - ref)))
    assert jnp.allclose(out, ref, atol=5e-3, rtol=5e-3), err

    print("KERNEL_OK")
</pallas_src>

<mosaic_0001>
module attributes {stable_mosaic.version = 11 : i64} {
  func.func @_ngcf_kernel(%arg0: i32, %arg1: i32, %arg2: memref<256x256xbf16, #tpu.memory_space<vmem>>, %arg3: memref<256x128xbf16, #tpu.memory_space<vmem>>, %arg4: memref<256x128xf32, #tpu.memory_space<vmem>>, %arg5: memref<128x128xf32, #tpu.memory_space<vmem>>, %arg6: memref<1x128xf32, #tpu.memory_space<vmem>>, %arg7: memref<128x128xf32, #tpu.memory_space<vmem>>, %arg8: memref<1x128xf32, #tpu.memory_space<vmem>>, %arg9: memref<256x128xf32, #tpu.memory_space<vmem>>, %arg10: memref<256x128xf32, #tpu.memory_space<vmem>>) attributes {dimension_semantics = [#tpu.dimension_semantics<parallel>, #tpu.dimension_semantics<arbitrary>], iteration_bounds = array<i64: 2, 2>, scalar_prefetch = 0 : i64, scratch_operands = 1 : i64, tpu.core_type = #tpu.core_type<tc>, window_params = [{transform_indices = @transform_0, window_bounds = array<i64: 256, 256>}, {transform_indices = @transform_1, window_bounds = array<i64: 256, 128>}, {transform_indices = @transform_2, window_bounds = array<i64: 256, 128>}, {pipeline_mode = #tpu.pipeline_mode<synchronous>, transform_indices = @transform_3, window_bounds = array<i64: 128, 128>}, {pipeline_mode = #tpu.pipeline_mode<synchronous>, transform_indices = @transform_4, window_bounds = array<i64: 1, 128>}, {pipeline_mode = #tpu.pipeline_mode<synchronous>, transform_indices = @transform_5, window_bounds = array<i64: 128, 128>}, {pipeline_mode = #tpu.pipeline_mode<synchronous>, transform_indices = @transform_6, window_bounds = array<i64: 1, 128>}, {transform_indices = @transform_7, window_bounds = array<i64: 256, 128>}]} {
    %c0_i32 = arith.constant 0 : i32
    %0 = arith.cmpi eq, %arg1, %c0_i32 : i32
    %1 = arith.extui %0 : i1 to i32
    %c0_i32_0 = arith.constant 0 : i32
    %2 = arith.cmpi ne, %1, %c0_i32_0 : i32
    scf.if %2 {
      %cst_9 = arith.constant 0.000000e+00 : f32
      %12 = vector.broadcast %cst_9 : f32 to vector<256x128xf32>
      %c0_10 = arith.constant 0 : index
      %c0_11 = arith.constant 0 : index
      %13 = vector.load %arg10[%c0_10, %c0_11] : memref<256x128xf32, #tpu.memory_space<vmem>>, vector<256x128xf32>
      tpu.vector_store %arg10[%c0_10, %c0_11], %12 {strides = array<i32>} : memref<256x128xf32, #tpu.memory_space<vmem>>, vector<256x128xf32>,
    } else {
    }
    %c0 = arith.constant 0 : index
    %c0_1 = arith.constant 0 : index
    %3 = vector.load %arg10[%c0, %c0_1] : memref<256x128xf32, #tpu.memory_space<vmem>>, vector<256x128xf32>
    %c0_2 = arith.constant 0 : index
    %c0_3 = arith.constant 0 : index
    %4 = vector.load %arg2[%c0_2, %c0_3] : memref<256x256xbf16, #tpu.memory_space<vmem>>, vector<256x256xbf16>
    %c0_4 = arith.constant 0 : index
    %c0_5 = arith.constant 0 : index
    %5 = vector.load %arg3[%c0_4, %c0_5] : memref<256x128xbf16, #tpu.memory_space<vmem>>, vector<256x128xbf16>
    %cst = arith.constant dense<0.000000e+00> : vector<256x128xf32>
    %6 = tpu.matmul %4, %5, %cst {dimension_numbers = #tpu.dot_dimension_numbers<[1], [0], [0], [1], [0, 0, 1, 1], [], []>} : vector<256x256xbf16>, vector<256x128xbf16>, vector<256x128xf32> -> vector<256x128xf32>
    %7 = arith.addf %3, %6 : vector<256x128xf32>
    %c0_6 = arith.constant 0 : index
    %c0_7 = arith.constant 0 : index
    %8 = vector.load %arg10[%c0_6, %c0_7] : memref<256x128xf32, #tpu.memory_space<vmem>>, vector<256x128xf32>
    tpu.vector_store %arg10[%c0_6, %c0_7], %7 {strides = array<i32>} : memref<256x128xf32, #tpu.memory_space<vmem>>, vector<256x128xf32>,
    %c1_i32 = arith.constant 1 : i32
    %9 = arith.cmpi eq, %arg1, %c1_i32 : i32
    %10 = arith.extui %9 : i1 to i32
    %c0_i32_8 = arith.constant 0 : i32
    %11 = arith.cmpi ne, %10, %c0_i32_8 : i32
    scf.if %11 {
      %c0_9 = arith.constant 0 : index
      %c0_10 = arith.constant 0 : index
      %12 = vector.load %arg10[%c0_9, %c0_10] : memref<256x128xf32, #tpu.memory_space<vmem>>, vector<256x128xf32>
      %c0_11 = arith.constant 0 : index
      %c0_12 = arith.constant 0 : index
      %13 = vector.load %arg4[%c0_11, %c0_12] : memref<256x128xf32, #tpu.memory_space<vmem>>, vector<256x128xf32>
      %c0_13 = arith.constant 0 : index
      %c0_14 = arith.constant 0 : index
      %14 = vector.load %arg5[%c0_13, %c0_14] : memref<128x128xf32, #tpu.memory_space<vmem>>, vector<128x128xf32>
      %cst_15 = arith.constant dense<0.000000e+00> : vector<256x128xf32>
      %15 = tpu.matmul %12, %14, %cst_15 {dimension_numbers = #tpu.dot_dimension_numbers<[1], [0], [0], [1], [0, 0, 1, 1], [], []>} : vector<256x128xf32>, vector<128x128xf32>, vector<256x128xf32> -> vector<256x128xf32>
      %c0_16 = arith.constant 0 : index
      %c0_17 = arith.constant 0 : index
      %16 = vector.load %arg6[%c0_16, %c0_17] : memref<1x128xf32, #tpu.memory_space<vmem>>, vector<1x128xf32>
      %17 = vector.broadcast %16 : vector<1x128xf32> to vector<256x128xf32>
      %18 = arith.addf %15, %17 : vector<256x128xf32>
      %19 = arith.mulf %12, %13 : vector<256x128xf32>
      %c0_18 = arith.constant 0 : index
      %c0_19 = arith.constant 0 : index
      %20 = vector.load %arg7[%c0_18, %c0_19] : memref<128x128xf32, #tpu.memory_space<vmem>>, vector<128x128xf32>
      %cst_20 = arith.constant dense<0.000000e+00> : vector<256x128xf32>
      %21 = tpu.matmul %19, %20, %cst_20 {dimension_numbers = #tpu.dot_dimension_numbers<[1], [0], [0], [1], [0, 0, 1, 1], [], []>} : vector<256x128xf32>, vector<128x128xf32>, vector<256x128xf32> -> vector<256x128xf32>
      %c0_21 = arith.constant 0 : index
      %c0_22 = arith.constant 0 : index
      %22 = vector.load %arg8[%c0_21, %c0_22] : memref<1x128xf32, #tpu.memory_space<vmem>>, vector<1x128xf32>
      %23 = vector.broadcast %22 : vector<1x128xf32> to vector<256x128xf32>
      %24 = arith.addf %21, %23 : vector<256x128xf32>
      %cst_23 = arith.constant 0.000000e+00 : f32
      %25 = vector.broadcast %cst_23 : f32 to vector<256x128xf32>
      %26 = arith.cmpf oge, %18, %25 : vector<256x128xf32>
      %cst_24 = arith.constant 2.000000e-01 : f32
      %27 = vector.broadcast %cst_24 : f32 to vector<256x128xf32>
      %28 = arith.mulf %27, %18 : vector<256x128xf32>
      %29 = arith.select %26, %18, %28 : vector<256x128xi1>, vector<256x128xf32>
      %cst_25 = arith.constant 0.000000e+00 : f32
      %30 = vector.broadcast %cst_25 : f32 to vector<256x128xf32>
      %31 = arith.cmpf oge, %24, %30 : vector<256x128xf32>
      %cst_26 = arith.constant 2.000000e-01 : f32
      %32 = vector.broadcast %cst_26 : f32 to vector<256x128xf32>
      %33 = arith.mulf %32, %24 : vector<256x128xf32>
      %34 = arith.select %31, %24, %33 : vector<256x128xi1>, vector<256x128xf32>
      %35 = arith.addf %29, %34 : vector<256x128xf32>
      %c0_27 = arith.constant 0 : index
      %c0_28 = arith.constant 0 : index
      %36 = vector.load %arg9[%c0_27, %c0_28] : memref<256x128xf32, #tpu.memory_space<vmem>>, vector<256x128xf32>
      tpu.vector_store %arg9[%c0_27, %c0_28], %35 {strides = array<i32>} : memref<256x128xf32, #tpu.memory_space<vmem>>, vector<256x128xf32>,
    } else {
    }
    return
  }
  func.func @transform_0(%arg0: i32, %arg1: i32) -> (i32, i32) {
    %c0_i32 = arith.constant 0 : i32
    return %arg0, %arg1 : i32, i32
  }
  func.func @transform_1(%arg0: i32, %arg1: i32) -> (i32, i32) {
    %c0_i32 = arith.constant 0 : i32
    %c0_i32_0 = arith.constant 0 : i32
    return %arg1, %c0_i32 : i32, i32
  }
  func.func @transform_2(%arg0: i32, %arg1: i32) -> (i32, i32) {
    %c0_i32 = arith.constant 0 : i32
    %c0_i32_0 = arith.constant 0 : i32
    return %arg0, %c0_i32 : i32, i32
  }
  func.func @transform_3(%arg0: i32, %arg1: i32) -> (i32, i32) {
    %c0_i32 = arith.constant 0 : i32
    %c0_i32_0 = arith.constant 0 : i32
    %c0_i32_1 = arith.constant 0 : i32
    return %c0_i32, %c0_i32_0 : i32, i32
  }
  func.func @transform_4(%arg0: i32, %arg1: i32) -> (i32, i32) {
    %c0_i32 = arith.constant 0 : i32
    %c0_i32_0 = arith.constant 0 : i32
    %c0_i32_1 = arith.constant 0 : i32
    return %c0_i32, %c0_i32_0 : i32, i32
  }
  func.func @transform_5(%arg0: i32, %arg1: i32) -> (i32, i32) {
    %c0_i32 = arith.constant 0 : i32
    %c0_i32_0 = arith.constant 0 : i32
    %c0_i32_1 = arith.constant 0 : i32
    return %c0_i32, %c0_i32_0 : i32, i32
  }
  func.func @transform_6(%arg0: i32, %arg1: i32) -> (i32, i32) {
    %c0_i32 = arith.constant 0 : i32
    %c0_i32_0 = arith.constant 0 : i32
    %c0_i32_1 = arith.constant 0 : i32
    return %c0_i32, %c0_i32_0 : i32, i32
  }
  func.func @transform_7(%arg0: i32, %arg1: i32) -> (i32, i32) {
    %c0_i32 = arith.constant 0 : i32
    %c0_i32_0 = arith.constant 0 : i32
    return %arg0, %c0_i32 : i32, i32
  }
}

</mosaic_0001>

<llo_original>
// kernel: ngcf_conv.1
$region0: #{ngcf_conv.1}
  #allocation0 [shape = 'u32[]', space=smem, size = 0x4, offset = 0x4, fixed_abs, tag = 'smem constant byte address 0x4 - core index']
  #allocation1 [shape = 'u32[144,128]{1,0:T(1,128)}', space=vmem, size = 0x12000, scoped, tag = 'internal scratch']
  #allocation2 [shape = 'f32[256,128]{1,0:T(8,128)}', space=vmem, size = 0x20000, scoped, tag = 'scratch operand']
  %s0 = inlined_call_operand.vmem [shape: bf16[512,512], index: 0, kind: input, shape index: {}]
  %s1 = inlined_call_operand.vmem [shape: bf16[512,128], index: 1, kind: input, shape index: {}]
  %s2 = inlined_call_operand.vmem [shape: f32[512,128], index: 2, kind: input, shape index: {}]
  %s3 = inlined_call_operand.vmem [shape: f32[128,128], index: 3, kind: input, shape index: {}]
  %s4 = inlined_call_operand.vmem [shape: f32[1,128], index: 4, kind: input, shape index: {}]
  %s5 = inlined_call_operand.vmem [shape: f32[128,128], index: 5, kind: input, shape index: {}]
  %s6 = inlined_call_operand.vmem [shape: f32[1,128], index: 6, kind: input, shape index: {}]
  %s7 = inlined_call_operand.vmem [shape: f32[512,128], index: 7, kind: output, shape index: {}]
  %s8 = sld [smem:[#allocation0]]
  $region107: #{ngcf_conv.1} parent=0
    _
  %s10 = ssub.s32 1, %s8
  %s11 = scalar_select 0, %s10, %s8
  $region1: #{ngcf_conv.1} parent=0
    #allocation3 [shape = 'u8[262144]{0}', space=vmem, size = 0x40000, scoped, tag = 'input window, operand 0']
    loop: start=0, step=1, limit=6
    $region2: #{ngcf_conv.1} parent=1 // loop_pre_header
      _
    $region3: #{ngcf_conv.1} parent=1 // loop_header
      %s13 = sphi 0, %s17
      %p14 = scmp.ge.s32.totalorder %s13, 6
      %s20 = sphi 0, %s32
      %s21 = sphi 0, %s28
      %s22 = sphi 0, %s20
      %s23 = sphi 0, %s21
      %s24 = sphi 0, %s22
      %s25 = sphi 0, %s23
      %s37 = sphi 0, %s39
      %s40 = sphi 0, %s37
      %s41 = sphi 0, %s40
      %s57 = sphi 0, %s41
      %s63 = sphi 0, %s65
      %s66 = sphi 0, %s63
      %s67 = sphi 0, %s66
      %s83 = sphi 0, %s67
      %s89 = sphi 0, %s91
      %s92 = sphi 0, %s89
      %s93 = sphi 0, %s92
      %s109 = sphi 0, %s93
      %s113 = sphi 0, %s113
      %s115 = sphi 0, %s113
      %s116 = sphi 0, %s115
      %s130 = sphi 0, %s116
      %s134 = sphi 0, %s134
      %s136 = sphi 0, %s134
      %s137 = sphi 0, %s136
      %s151 = sphi 0, %s137
      %s155 = sphi 0, %s155
      %s157 = sphi 0, %s155
      %s158 = sphi 0, %s157
      %s172 = sphi 0, %s158
      %s176 = sphi 0, %s176
      %s178 = sphi 0, %s176
      %s179 = sphi 0, %s178
      %s193 = sphi 0, %s179
      %s199 = sphi 0, %s201
      %s202 = sphi 0, %s199
      %s203 = sphi 0, %s202
      %s219 = sphi 0, %s203
    $region4: #{ngcf_conv.1} parent=1 // loop_header_branch
      %16 = sbr.rel (%p14) target = $region8
    $region5: #{ngcf_conv.1} parent=1 // loop_body
      %s18 = ssub.s32 %s13, 1
      %s19 = ssub.s32 %s13, 2
      %s26 = sadd.s32 1, %s21
      %p27 = scmp.ge.s32.totalorder %s26, 2
      %s28 = scalar_select %p27, 0, %s26
      %s29 = sadd.s32 1, %s20
      %s30 = scalar_select %p27, %s29, %s20
      %p31 = scmp.ge.s32.totalorder %s30, 2
      %s32 = scalar_select %p31, 0, %s30
      %s33 = ssub.s32 %s20, %s32
      %s34 = ssub.s32 %s21, %s28
      %s35 = sor.u32 %s33, %s34
      %p36 = scmp.eq.s32.totalorder %s35, 0
      %s38 = sadd.s32 %s37, 1
      %s39 = scalar_select %p36, %s37, %s38
      %p42 = pneg %p36
      %p43 = scmp.eq.s32.totalorder %s13, 3
      %p44 = por %p42, %p43
      %p45 = scmp.ne.s32.totalorder %s37, %s40
      %p46 = scmp.eq.s32.totalorder %s13, 0
      %p47 = por %p45, %p46
      %p48 = scmp.ne.s32.totalorder %s37, %s40
      %p49 = scmp.eq.s32.totalorder %s18, 3
      %p50 = por %p48, %p49
      %p51 = scmp.ne.s32.totalorder %s40, %s41
      %p52 = scmp.eq.s32.totalorder %s18, 0
      %p53 = por %p51, %p52
      %p54 = scmp.ne.s32.totalorder %s40, %s41
      %p55 = scmp.eq.s32.totalorder %s19, 3
      %p56 = por %p54, %p55
      %p58 = scmp.ne.s32.totalorder %s41, %s57
      %p59 = scmp.eq.s32.totalorder %s19, 0
      %p60 = por %p58, %p59
      %s61 = ssub.s32 %s21, %s28
      %p62 = scmp.eq.s32.totalorder %s61, 0
      %s64 = sadd.s32 %s63, 1
      %s65 = scalar_select %p62, %s63, %s64
      %p68 = pneg %p62
      %p69 = scmp.eq.s32.totalorder %s13, 3
      %p70 = por %p68, %p69
      %p71 = scmp.ne.s32.totalorder %s63, %s66
      %p72 = scmp.eq.s32.totalorder %s13, 0
      %p73 = por %p71, %p72
      %p74 = scmp.ne.s32.totalorder %s63, %s66
      %p75 = scmp.eq.s32.totalorder %s18, 3
      %p76 = por %p74, %p75
      %p77 = scmp.ne.s32.totalorder %s66, %s67
      %p78 = scmp.eq.s32.totalorder %s18, 0
      %p79 = por %p77, %p78
      %p80 = scmp.ne.s32.totalorder %s66, %s67
      %p81 = scmp.eq.s32.totalorder %s19, 3
      %p82 = por %p80, %p81
      %p84 = scmp.ne.s32.totalorder %s67, %s83
      %p85 = scmp.eq.s32.totalorder %s19, 0
      %p86 = por %p84, %p85
      %s87 = ssub.s32 %s20, %s32
      %p88 = scmp.eq.s32.totalorder %s87, 0
      %s90 = sadd.s32 %s89, 1
      %s91 = scalar_select %p88, %s89, %s90
      %p94 = pneg %p88
      %p95 = scmp.eq.s32.totalorder %s13, 3
      %p96 = por %p94, %p95
      %p97 = scmp.ne.s32.totalorder %s89, %s92
      %p98 = scmp.eq.s32.totalorder %s13, 0
      %p99 = por %p97, %p98
      %p100 = scmp.ne.s32.totalorder %s89, %s92
      %p101 = scmp.eq.s32.totalorder %s18, 3
      %p102 = por %p100, %p101
      %p103 = scmp.ne.s32.totalorder %s92, %s93
      %p104 = scmp.eq.s32.totalorder %s18, 0
      %p105 = por %p103, %p104
      %p106 = scmp.ne.s32.totalorder %s92, %s93
      %p107 = scmp.eq.s32.totalorder %s19, 3
      %p108 = por %p106, %p107
      %p110 = scmp.ne.s32.totalorder %s93, %s109
      %p111 = scmp.eq.s32.totalorder %s19, 0
      %p112 = por %p110, %p111
      %s114 = sadd.s32 %s113, 1
      %p117 = scmp.eq.s32.totalorder %s13, 3
      %p118 = scmp.ne.s32.totalorder %s113, %s115
      %p119 = scmp.eq.s32.totalorder %s13, 0
      %p120 = por %p118, %p119
      %p121 = scmp.ne.s32.totalorder %s113, %s115
      %p122 = scmp.eq.s32.totalorder %s18, 3
      %p123 = por %p121, %p122
      %p124 = scmp.ne.s32.totalorder %s115, %s116
      %p125 = scmp.eq.s32.totalorder %s18, 0
      %p126 = por %p124, %p125
      %p127 = scmp.ne.s32.totalorder %s115, %s116
      %p128 = scmp.eq.s32.totalorder %s19, 3
      %p129 = por %p127, %p128
      %p131 = scmp.ne.s32.totalorder %s116, %s130
      %p132 = scmp.eq.s32.totalorder %s19, 0
      %p133 = por %p131, %p132
      %s135 = sadd.s32 %s134, 1
      %p138 = scmp.eq.s32.totalorder %s13, 3
      %p139 = scmp.ne.s32.totalorder %s134, %s136
      %p140 = scmp.eq.s32.totalorder %s13, 0
      %p141 = por %p139, %p140
      %p142 = scmp.ne.s32.totalorder %s134, %s136
      %p143 = scmp.eq.s32.totalorder %s18, 3
      %p144 = por %p142, %p143
      %p145 = scmp.ne.s32.totalorder %s136, %s137
      %p146 = scmp.eq.s32.totalorder %s18, 0
      %p147 = por %p145, %p146
      %p148 = scmp.ne.s32.totalorder %s136, %s137
      %p149 = scmp.eq.s32.totalorder %s19, 3
      %p150 = por %p148, %p149
      %p152 = scmp.ne.s32.totalorder %s137, %s151
      %p153 = scmp.eq.s32.totalorder %s19, 0
      %p154 = por %p152, %p153
      %s156 = sadd.s32 %s155, 1
      %p159 = scmp.eq.s32.totalorder %s13, 3
      %p160 = scmp.ne.s32.totalorder %s155, %s157
      %p161 = scmp.eq.s32.totalorder %s13, 0
      %p162 = por %p160, %p161
      %p163 = scmp.ne.s32.totalorder %s155, %s157
      %p164 = scmp.eq.s32.totalorder %s18, 3
      %p165 = por %p163, %p164
      %p166 = scmp.ne.s32.totalorder %s157, %s158
      %p167 = scmp.eq.s32.totalorder %s18, 0
      %p168 = por %p166, %p167
      %p169 = scmp.ne.s32.totalorder %s157, %s158
      %p170 = scmp.eq.s32.totalorder %s19, 3
      %p171 = por %p169, %p170
      %p173 = scmp.ne.s32.totalorder %s158, %s172
      %p174 = scmp.eq.s32.totalorder %s19, 0
      %p175 = por %p173, %p174
      %s177 = sadd.s32 %s176, 1
      %p180 = scmp.eq.s32.totalorder %s13, 3
      %p181 = scmp.ne.s32.totalorder %s176, %s178
      %p182 = scmp.eq.s32.totalorder %s13, 0
      %p183 = por %p181, %p182
      %p184 = scmp.ne.s32.totalorder %s176, %s178
      %p185 = scmp.eq.s32.totalorder %s18, 3
      %p186 = por %p184, %p185
      %p187 = scmp.ne.s32.totalorder %s178, %s179
      %p188 = scmp.eq.s32.totalorder %s18, 0
      %p189 = por %p187, %p188
      %p190 = scmp.ne.s32.totalorder %s178, %s179
      %p191 = scmp.eq.s32.totalorder %s19, 3
      %p192 = por %p190, %p191
      %p194 = scmp.ne.s32.totalorder %s179, %s193
      %p195 = scmp.eq.s32.totalorder %s19, 0
      %p196 = por %p194, %p195
      %s197 = ssub.s32 %s20, %s32
      %p198 = scmp.eq.s32.totalorder %s197, 0
      %s200 = sadd.s32 %s199, 1
      %s201 = scalar_select %p198, %s199, %s200
      %p204 = pneg %p198
      %p205 = scmp.eq.s32.totalorder %s13, 3
      %p206 = por %p204, %p205
      %p207 = scmp.ne.s32.totalorder %s199, %s202
      %p208 = scmp.eq.s32.totalorder %s13, 0
      %p209 = por %p207, %p208
      %p210 = scmp.ne.s32.totalorder %s199, %s202
      %p211 = scmp.eq.s32.totalorder %s18, 3
      %p212 = por %p210, %p211
      %p213 = scmp.ne.s32.totalorder %s202, %s203
      %p214 = scmp.eq.s32.totalorder %s18, 0
      %p215 = por %p213, %p214
      %p216 = scmp.ne.s32.totalorder %s202, %s203
      %p217 = scmp.eq.s32.totalorder %s19, 3
      %p218 = por %p216, %p217
      %p220 = scmp.ne.s32.totalorder %s203, %s219
      %p221 = scmp.eq.s32.totalorder %s19, 0
      %p222 = por %p220, %p221
      %p223 = scmp.le.s32.totalorder 1, %s13
      %p224 = scmp.lt.s32.totalorder %s13, 5
      %p225 = pnand %p223, %p224
      %p226 = pneg %p225
      // Predicated region
      $region9: #{ngcf_conv.1} parent=5 // pred_check
        _
      $region10: #{ngcf_conv.1} parent=5 // pred_check_branch
        %228 = sbr.rel (%p225) target = $region12
      $region11: #{ngcf_conv.1} parent=5 // pred_region
        %s229 = ssub.s32 %s13, 1
        // Predicated region
        $region13: #{ngcf_conv.1} parent=11 // pred_check
          %p230 = pneg %p126
        $region14: #{ngcf_conv.1} parent=11 // pred_check_branch
          %232 = sbr.rel (%p230) target = $region16
        $region15: #{ngcf_conv.1} parent=11 // pred_region
          _
        $region16: #{ngcf_conv.1} parent=11 // pred_fallthru
          _
        // Predicated region
        $region17: #{ngcf_conv.1} parent=11 // pred_check
          %p233 = pneg %p147
        $region18: #{ngcf_conv.1} parent=11 // pred_check_branch
          %235 = sbr.rel (%p233) target = $region20
        $region19: #{ngcf_conv.1} parent=11 // pred_region
          _
        $region20: #{ngcf_conv.1} parent=11 // pred_fallthru
          _
        // Predicated region
        $region21: #{ngcf_conv.1} parent=11 // pred_check
          %p236 = pneg %p168
        $region22: #{ngcf_conv.1} parent=11 // pred_check_branch
          %238 = sbr.rel (%p236) target = $region24
        $region23: #{ngcf_conv.1} parent=11 // pred_region
          _
        $region24: #{ngcf_conv.1} parent=11 // pred_fallthru
          _
        // Predicated region
        $region25: #{ngcf_conv.1} parent=11 // pred_check
          %p239 = pneg %p189
        $region26: #{ngcf_conv.1} parent=11 // pred_check_branch
          %241 = sbr.rel (%p239) target = $region28
        $region27: #{ngcf_conv.1} parent=11 // pred_region
          _
        $region28: #{ngcf_conv.1} parent=11 // pred_fallthru
          _
      $region12: #{ngcf_conv.1} parent=5 // pred_fallthru
        _
      %p242 = scmp.lt.s32.totalorder %s13, 4
      // Predicated region
      $region29: #{ngcf_conv.1} parent=5 // pred_check
        %p243 = pneg %p242
      $region30: #{ngcf_conv.1} parent=5 // pred_check_branch
        %245 = sbr.rel (%p243) target = $region32
      $region31: #{ngcf_conv.1} parent=5 // pred_region
        // Predicated region
        $region33: #{ngcf_conv.1} parent=31 // pred_check
          %p246 = pneg %p47
        $region34: #{ngcf_conv.1} parent=31 // pred_check_branch
          %248 = sbr.rel (%p246) target = $region36
        $region35: #{ngcf_conv.1} parent=31 // pred_region
          %s249 = sand.u32 %s37, 1
          %s250 = sand.u32 %s37, 1
          %s251 = smul.addr %s250, 256
          %s252 = scalar_lea.vmem [#allocation3], %s251
          %s253 = smul.u32 32, %s20
          %s254 = smul.u32 2, %s21
          %s255 = smul.addr %s253, 4
          %s256 = sadd.s32 %s254, %s255
          %s257 = smul.addr %s256, 4
          %s258 = scalar_lea.vmem %s0, %s257
          // Predicated region
          $region37: #{ngcf_conv.1} parent=35 // pred_check
            _
          $region38: #{ngcf_conv.1} parent=35 // pred_check_branch
            %260 = sbr.rel (0) target = $region40
          $region39: #{ngcf_conv.1} parent=35 // pred_region
            // Predicated region
            $region41: #{ngcf_conv.1} parent=39 // pred_check
              _
            $region42: #{ngcf_conv.1} parent=39 // pred_check_branch
              %262 = sbr.rel (0) target = $region44
            $region43: #{ngcf_conv.1} parent=39 // pred_region
              // Predicated region
              $region56: #{ngcf_conv.1} parent=43 // pred_check
                _
              $region57: #{ngcf_conv.1} parent=43 // pred_check_branch
                %339 = sbr.rel (0) target = $region59
              $region58: #{ngcf_conv.1} parent=43 // pred_region
                loop: start=0, step=1, limit=1
                $region60: #{ngcf_conv.1} parent=58 // loop_pre_header
                  _
                $region61: #{ngcf_conv.1} parent=58 // loop_header
                  %s341 = sphi 0, %s345
                  %p342 = scmp.ge.s32.totalorder %s341, 1
                  %s346 = sphi %s258, %s258
                  %s347 = sphi %s252, %s252
                $region62: #{ngcf_conv.1} parent=58 // loop_header_branch
                  %344 = sbr.rel (%p342) target = $region66
                $region63: #{ngcf_conv.1} parent=58 // loop_body
                  %v348 = vld [vmem:[%s346] sm:$0xff]
                  %349 = vst [vmem:[%s347] sm:$0xff] %v348
                  %v350 = vld [vmem:[%s346 + $0x10] sm:$0xff]
                  %351 = vst [vmem:[%s347 + $0x8] sm:$0xff] %v350
                  %v352 = vld [vmem:[%s346 + $0x20] sm:$0xff]
                  %353 = vst [vmem:[%s347 + $0x10] sm:$0xff] %v352
                  %v354 = vld [vmem:[%s346 + $0x30] sm:$0xff]
                  %355 = vst [vmem:[%s347 + $0x18] sm:$0xff] %v354
                  %v356 = vld [vmem:[%s346 + $0x40] sm:$0xff]
                  %357 = vst [vmem:[%s347 + $0x20] sm:$0xff] %v356
                  %v358 = vld [vmem:[%s346 + $0x50] sm:$0xff]
                  %359 = vst [vmem:[%s347 + $0x28] sm:$0xff] %v358
                  %v360 = vld [vmem:[%s346 + $0x60] sm:$0xff]
                  %361 = vst [vmem:[%s347 + $0x30] sm:$0xff] %v360
                  %v362 = vld [vmem:[%s346 + $0x70] sm:$0xff]
                  %363 = vst [vmem:[%s347 + $0x38] sm:$0xff] %v362
                  %v364 = vld [vmem:[%s346 + $0x80] sm:$0xff]
                  %365 = vst [vmem:[%s347 + $0x40] sm:$0xff] %v364
                  %v366 = vld [vmem:[%s346 + $0x90] sm:$0xff]
                  %367 = vst [vmem:[%s347 + $0x48] sm:$0xff] %v366
                  %v368 = vld [vmem:[%s346 + $0xa0] sm:$0xff]
                  %369 = vst [vmem:[%s347 + $0x50] sm:$0xff] %v368
                  %v370 = vld [vmem:[%s346 + $0xb0] sm:$0xff]
                  %371 = vst [vmem:[%s347 + $0x58] sm:$0xff] %v370
                  %v372 = vld [vmem:[%s346 + $0xc0] sm:$0xff]
                  %373 = vst [vmem:[%s347 + $0x60] sm:$0xff] %v372
                  %v374 = vld [vmem:[%s346 + $0xd0] sm:$0xff]
                  %375 = vst [vmem:[%s347 + $0x68] sm:$0xff] %v374
                  %v376 = vld [vmem:[%s346 + $0xe0] sm:$0xff]
                  %377 = vst [vmem:[%s347 + $0x70] sm:$0xff] %v376
                  %v378 = vld [vmem:[%s346 + $0xf0] sm:$0xff]
                  %379 = vst [vmem:[%s347 + $0x78] sm:$0xff] %v378
                  %v380 = vld [vmem:[%s346 + $0x100] sm:$0xff]
                  %381 = vst [vmem:[%s347 + $0x80] sm:$0xff] %v380
                  %v382 = vld [vmem:[%s346 + $0x110] sm:$0xff]
                  %383 = vst [vmem:[%s347 + $0x88] sm:$0xff] %v382
                  %v384 = vld [vmem:[%s346 + $0x120] sm:$0xff]
                  %385 = vst [vmem:[%s347 + $0x90] sm:$0xff] %v384
                  %v386 = vld [vmem:[%s346 + $0x130] sm:$0xff]
                  %387 = vst [vmem:[%s347 + $0x98] sm:$0xff] %v386
                  %v388 = vld [vmem:[%s346 + $0x140] sm:$0xff]
                  %389 = vst [vmem:[%s347 + $0xa0] sm:$0xff] %v388
                  %v390 = vld [vmem:[%s346 + $0x150] sm:$0xff]
                  %391 = vst [vmem:[%s347 + $0xa8] sm:$0xff] %v390
                  %v392 = vld [vmem:[%s346 + $0x160] sm:$0xff]
                  %393 = vst [vmem:[%s347 + $0xb0] sm:$0xff] %v392
                  %v394 = vld [vmem:[%s346 + $0x170] sm:$0xff]
                  %395 = vst [vmem:[%s347 + $0xb8] sm:$0xff] %v394
                  %v396 = vld [vmem:[%s346 + $0x180] sm:$0xff]
                  %397 = vst [vmem:[%s347 + $0xc0] sm:$0xff] %v396
                  %v398 = vld [vmem:[%s346 + $0x190] sm:$0xff]
                  %399 = vst [vmem:[%s347 + $0xc8] sm:$0xff] %v398
                  %v400 = vld [vmem:[%s346 + $0x1a0] sm:$0xff]
                  %401 = vst [vmem:[%s347 + $0xd0] sm:$0xff] %v400
                  %v402 = vld [vmem:[%s346 + $0x1b0] sm:$0xff]
                  %403 = vst [vmem:[%s347 + $0xd8] sm:$0xff] %v402
                  %v404 = vld [vmem:[%s346 + $0x1c0] sm:$0xff]
                  %405 = vst [vmem:[%s347 + $0xe0] sm:$0xff] %v404
                  %v406 = vld [vmem:[%s346 + $0x1d0] sm:$0xff]
                  %407 = vst [vmem:[%s347 + $0xe8] sm:$0xff] %v406
                  %v408 = vld [vmem:[%s346 + $0x1e0] sm:$0xff]
                  %409 = vst [vmem:[%s347 + $0xf0] sm:$0xff] %v408
                  %v410 = vld [vmem:[%s346 + $0x1f0] sm:$0xff]
                  %411 = vst [vmem:[%s347 + $0xf8] sm:$0xff] %v410
                $region64: #{ngcf_conv.1} parent=58 // loop_footer
                  %s345 = sadd.s32 1, %s341
                $region65: #{ngcf_conv.1} parent=58 // loop_footer_branch
                  %340 = sbr.rel target = $region61
                $region66: #{ngcf_conv.1} parent=58 // loop_exit
                  _
              $region59: #{ngcf_conv.1} parent=43 // pred_fallthru
                _
              // Predicated region
              $region67: #{ngcf_conv.1} parent=43 // pred_check
                _
              $region68: #{ngcf_conv.1} parent=43 // pred_check_branch
                %413 = sbr.rel target = $region70
              $region69: #{ngcf_conv.1} parent=43 // pred_region
                _
              $region70: #{ngcf_conv.1} parent=43 // pred_fallthru
                _
            $region44: #{ngcf_conv.1} parent=39 // pred_fallthru
              _
            // Predicated region
            $region45: #{ngcf_conv.1} parent=39 // pred_check
              _
            $region46: #{ngcf_conv.1} parent=39 // pred_check_branch
              %264 = sbr.rel target = $region48
            $region47: #{ngcf_conv.1} parent=39 // pred_region
              loop: start=0, step=1, limit=1
              $region49: #{ngcf_conv.1} parent=47 // loop_pre_header
                _
              $region50: #{ngcf_conv.1} parent=47 // loop_header
                %s267 = sphi 0, %s271
                %p268 = scmp.ge.s32.totalorder %s267, 1
                %s272 = sphi %s258, %s258
                %s273 = sphi %s252, %s252
              $region51: #{ngcf_conv.1} parent=47 // loop_header_branch
                %270 = sbr.rel (%p268) target = $region55
              $region52: #{ngcf_conv.1} parent=47 // loop_body
                %v274 = vld [vmem:[%s272] sm:$0xff]
                %275 = vst [vmem:[%s273] sm:$0xff] %v274
                %v276 = vld [vmem:[%s272 + $0x10] sm:$0xff]
                %277 = vst [vmem:[%s273 + $0x8] sm:$0xff] %v276
                %v278 = vld [vmem:[%s272 + $0x20] sm:$0xff]
                %279 = vst [vmem:[%s273 + $0x10] sm:$0xff] %v278
                %v280 = vld [vmem:[%s272 + $0x30] sm:$0xff]
                %281 = vst [vmem:[%s273 + $0x18] sm:$0xff] %v280
                %v282 = vld [vmem:[%s272 + $0x40] sm:$0xff]
                %283 = vst [vmem:[%s273 + $0x20] sm:$0xff] %v282
                %v284 = vld [vmem:[%s272 + $0x50] sm:$0xff]
                %285 = vst [vmem:[%s273 + $0x28] sm:$0xff] %v284
                %v286 = vld [vmem:[%s272 + $0x60] sm:$0xff]
                %287 = vst [vmem:[%s273 + $0x30] sm:$0xff] %v286
                %v288 = vld [vmem:[%s272 + $0x70] sm:$0xff]
                %289 = vst [vmem:[%s273 + $0x38] sm:$0xff] %v288
                %v290 = vld [vmem:[%s272 + $0x80] sm:$0xff]
                %291 = vst [vmem:[%s273 + $0x40] sm:$0xff] %v290
                %v292 = vld [vmem:[%s272 + $0x90] sm:$0xff]
                %293 = vst [vmem:[%s273 + $0x48] sm:$0xff] %v292
                %v294 = vld [vmem:[%s272 + $0xa0] sm:$0xff]
                %295 = vst [vmem:[%s273 + $0x50] sm:$0xff] %v294
                %v296 = vld [vmem:[%s272 + $0xb0] sm:$0xff]
                %297 = vst [vmem:[%s273 + $0x58] sm:$0xff] %v296
                %v298 = vld [vmem:[%s272 + $0xc0] sm:$0xff]
                %299 = vst [vmem:[%s273 + $0x60] sm:$0xff] %v298
                %v300 = vld [vmem:[%s272 + $0xd0] sm:$0xff]
                %301 = vst [vmem:[%s273 + $0x68] sm:$0xff] %v300
                %v302 = vld [vmem:[%s272 + $0xe0] sm:$0xff]
                %303 = vst [vmem:[%s273 + $0x70] sm:$0xff] %v302
                %v304 = vld [vmem:[%s272 + $0xf0] sm:$0xff]
                %305 = vst [vmem:[%s273 + $0x78] sm:$0xff] %v304
                %v306 = vld [vmem:[%s272 + $0x100] sm:$0xff]
                %307 = vst [vmem:[%s273 + $0x80] sm:$0xff] %v306
                %v308 = vld [vmem:[%s272 + $0x110] sm:$0xff]
                %309 = vst [vmem:[%s273 + $0x88] sm:$0xff] %v308
                %v310 = vld [vmem:[%s272 + $0x120] sm:$0xff]
                %311 = vst [vmem:[%s273 + $0x90] sm:$0xff] %v310
                %v312 = vld [vmem:[%s272 + $0x130] sm:$0xff]
                %313 = vst [vmem:[%s273 + $0x98] sm:$0xff] %v312
                %v314 = vld [vmem:[%s272 + $0x140] sm:$0xff]
                %315 = vst [vmem:[%s273 + $0xa0] sm:$0xff] %v314
                %v316 = vld [vmem:[%s272 + $0x150] sm:$0xff]
                %317 = vst [vmem:[%s273 + $0xa8] sm:$0xff] %v316
                %v318 = vld [vmem:[%s272 + $0x160] sm:$0xff]
                %319 = vst [vmem:[%s273 + $0xb0] sm:$0xff] %v318
                %v320 = vld [vmem:[%s272 + $0x170] sm:$0xff]
                %321 = vst [vmem:[%s273 + $0xb8] sm:$0xff] %v320
                %v322 = vld [vmem:[%s272 + $0x180] sm:$0xff]
                %323 = vst [vmem:[%s273 + $0xc0] sm:$0xff] %v322
                %v324 = vld [vmem:[%s272 + $0x190] sm:$0xff]
                %325 = vst [vmem:[%s273 + $0xc8] sm:$0xff] %v324
                %v326 = vld [vmem:[%s272 + $0x1a0] sm:$0xff]
                %327 = vst [vmem:[%s273 + $0xd0] sm:$0xff] %v326
                %v328 = vld [vmem:[%s272 + $0x1b0] sm:$0xff]
                %329 = vst [vmem:[%s273 + $0xd8] sm:$0xff] %v328
                %v330 = vld [vmem:[%s272 + $0x1c0] sm:$0xff]
                %331 = vst [vmem:[%s273 + $0xe0] sm:$0xff] %v330
                %v332 = vld [vmem:[%s272 + $0x1d0] sm:$0xff]
                %333 = vst [vmem:[%s273 + $0xe8] sm:$0xff] %v332
                %v334 = vld [vmem:[%s272 + $0x1e0] sm:$0xff]
                %335 = vst [vmem:[%s273 + $0xf0] sm:$0xff] %v334
                %v336 = vld [vmem:[%s272 + $0x1f0] sm:$0xff]
                %337 = vst [vmem:[%s273 + $0xf8] sm:$0xff] %v336
              $region53: #{ngcf_conv.1} parent=47 // loop_footer
                %s271 = sadd.s32 1, %s267
              $region54: #{ngcf_conv.1} parent=47 // loop_footer_branch
                %266 = sbr.rel target = $region50
              $region55: #{ngcf_conv.1} parent=47 // loop_exit
                _
            $region48: #{ngcf_conv.1} parent=39 // pred_fallthru
              _
          $region40: #{ngcf_conv.1} parent=35 // pred_fallthru
            _
          %414 = vnop
        $region36: #{ngcf_conv.1} parent=31 // pred_fallthru
          _
        // Predicated region
        $region71: #{ngcf_conv.1} parent=31 // pred_check
          %p415 = pneg %p73
        $region72: #{ngcf_conv.1} parent=31 // pred_check_branch
          %417 = sbr.rel (%p415) target = $region74
        $region73: #{ngcf_conv.1} parent=31 // pred_region
          %s418 = smul.u32 32, %s21
          %p419 = scmp.lt.s32.totalorder %s418, 63
          %s420 = scalar_select %p419, %s418, 63
          %s421 = smul.addr %s420, 4
          %s422 = scalar_lea.vmem %s1, %s421
          %s423 = smul.u32 32, %s21
        $region74: #{ngcf_conv.1} parent=31 // pred_fallthru
          _
        // Predicated region
        $region75: #{ngcf_conv.1} parent=31 // pred_check
          %p424 = pneg %p99
        $region76: #{ngcf_conv.1} parent=31 // pred_check_branch
          %426 = sbr.rel (%p424) target = $region78
        $region77: #{ngcf_conv.1} parent=31 // pred_region
          %s427 = smul.u32 32, %s20
          %p428 = scmp.lt.s32.totalorder %s427, 63
          %s429 = scalar_select %p428, %s427, 63
          %s430 = smul.addr %s429, 8
          %s431 = scalar_lea.vmem %s2, %s430
          %s432 = smul.u32 32, %s20
        $region78: #{ngcf_conv.1} parent=31 // pred_fallthru
          _
      $region32: #{ngcf_conv.1} parent=5 // pred_fallthru
        _
      %p433 = scmp.le.s32.totalorder 1, %s13
      %p434 = scmp.lt.s32.totalorder %s13, 5
      %p435 = pnand %p433, %p434
      %p436 = pneg %p435
      // Predicated region
      $region79: #{ngcf_conv.1} parent=5 // pred_check
        _
      $region80: #{ngcf_conv.1} parent=5 // pred_check_branch
        %438 = sbr.rel (%p435) target = $region82
      $region81: #{ngcf_conv.1} parent=5 // pred_region
        %s439 = ssub.s32 %s13, 1
        %s440 = sand.u32 %s40, 1
        %s441 = sand.u32 %s40, 1
        %s442 = smul.addr %s441, 256
        %s443 = scalar_lea.vmem [#allocation3], %s442
        // Predicated region
        $region83: #{ngcf_conv.1} parent=81 // pred_check
          %p444 = pneg %p53
        $region84: #{ngcf_conv.1} parent=81 // pred_check_branch
          %446 = sbr.rel (%p444) target = $region86
        $region85: #{ngcf_conv.1} parent=81 // pred_region
          _
        $region86: #{ngcf_conv.1} parent=81 // pred_fallthru
          _
        %s447 = sand.u32 %s40, 1
        %s448 = sand.u32 %s40, 1
        %s449 = smul.addr %s448, 256
        %s450 = scalar_lea.vmem [#allocation3], %s449
        %p451 = pneg %p53
        %p452 = pneg %p50
        %s453 = smul.u32 32, %s23
        %p454 = scmp.lt.s32.totalorder %s453, 63
        %s455 = scalar_select %p454, %s453, 63
        %s456 = smul.addr %s455, 4
        %s457 = scalar_lea.vmem %s1, %s456
        %p458 = pneg %p79
        %p459 = pneg %p76
        %s460 = smul.u32 32, %s22
        %p461 = scmp.lt.s32.totalorder %s460, 63
        %s462 = scalar_select %p461, %s460, 63
        %s463 = smul.addr %s462, 8
        %s464 = scalar_lea.vmem %s2, %s463
        %p465 = pneg %p105
        %p466 = pneg %p102
        %p467 = pneg %p126
        %p468 = pneg %p123
        %p469 = pneg %p147
        %p470 = pneg %p144
        %p471 = pneg %p168
        %p472 = pneg %p165
        %p473 = pneg %p189
        %p474 = pneg %p186
        %p475 = pneg %p215
        %p476 = pneg %p212
        %s477 = smul.u32 32, %s22
        %p478 = scmp.lt.s32.totalorder %s477, 63
        %s479 = scalar_select %p478, %s477, 63
        %s480 = smul.addr %s479, 8
        %s481 = scalar_lea.vmem %s7, %s480
        %s482 = smul.u32 32, %s22
        %s483 = smul.u32 2, %s23
        %s484 = smul.u32 32, %s23
        %p485 = scmp.lt.s32.totalorder %s484, 63
        %s486 = scalar_select %p485, %s484, 63
        %s487 = smul.addr %s486, 4
        %s488 = scalar_lea.vmem %s1, %s487
        %s489 = smul.u32 32, %s23
        %s490 = smul.u32 32, %s22
        %p491 = scmp.lt.s32.totalorder %s490, 63
        %s492 = scalar_select %p491, %s490, 63
        %s493 = smul.addr %s492, 8
        %s494 = scalar_lea.vmem %s2, %s493
        %s495 = smul.u32 32, %s22
        %s496 = smul.u32 32, %s22
        %p497 = scmp.lt.s32.totalorder %s496, 63
        %s498 = scalar_select %p497, %s496, 63
        %s499 = smul.addr %s498, 8
        %s500 = scalar_lea.vmem %s7, %s499
        %s501 = smul.u32 32, %s22
        %p503 = scmp.eq.s32.totalorder %s23, 0
        // Predicated region
        $region87: #{ngcf_conv.1} parent=81 // pred_check
          %p504 = pneg %p503
        $region88: #{ngcf_conv.1} parent=81 // pred_check_branch
          %506 = sbr.rel (%p504) target = $region90
        $region89: #{ngcf_conv.1} parent=81 // pred_region
          %507 = vst [vmem:[#allocation2] sm:$0xff] 0.0
          %508 = vst [vmem:[#allocation2 + $0x8] sm:$0xff] 0.0
          %509 = vst [vmem:[#allocation2 + $0x10] sm:$0xff] 0.0
          %510 = vst [vmem:[#allocation2 + $0x18] sm:$0xff] 0.0
          %511 = vst [vmem:[#allocation2 + $0x20] sm:$0xff] 0.0
          %512 = vst [vmem:[#allocation2 + $0x28] sm:$0xff] 0.0
          %513 = vst [vmem:[#allocation2 + $0x30] sm:$0xff] 0.0
          %514 = vst [vmem:[#allocation2 + $0x38] sm:$0xff] 0.0
          %515 = vst [vmem:[#allocation2 + $0x40] sm:$0xff] 0.0
          %516 = vst [vmem:[#allocation2 + $0x48] sm:$0xff] 0.0
          %517 = vst [vmem:[#allocation2 + $0x50] sm:$0xff] 0.0
          %518 = vst [vmem:[#allocation2 + $0x58] sm:$0xff] 0.0
          %519 = vst [vmem:[#allocation2 + $0x60] sm:$0xff] 0.0
          %520 = vst [vmem:[#allocation2 + $0x68] sm:$0xff] 0.0
          %521 = vst [vmem:[#allocation2 + $0x70] sm:$0xff] 0.0
          %522 = vst [vmem:[#allocation2 + $0x78] sm:$0xff] 0.0
          %523 = vst [vmem:[#allocation2 + $0x80] sm:$0xff] 0.0
          %524 = vst [vmem:[#allocation2 + $0x88] sm:$0xff] 0.0
          %525 = vst [vmem:[#allocation2 + $0x90] sm:$0xff] 0.0
          %526 = vst [vmem:[#allocation2 + $0x98] sm:$0xff] 0.0
          %527 = vst [vmem:[#allocation2 + $0xa0] sm:$0xff] 0.0
          %528 = vst [vmem:[#allocation2 + $0xa8] sm:$0xff] 0.0
          %529 = vst [vmem:[#allocation2 + $0xb0] sm:$0xff] 0.0
          %530 = vst [vmem:[#allocation2 + $0xb8] sm:$0xff] 0.0
          %531 = vst [vmem:[#allocation2 + $0xc0] sm:$0xff] 0.0
          %532 = vst [vmem:[#allocation2 + $0xc8] sm:$0xff] 0.0
          %533 = vst [vmem:[#allocation2 + $0xd0] sm:$0xff] 0.0
          %534 = vst [vmem:[#allocation2 + $0xd8] sm:$0xff] 0.0
          %535 = vst [vmem:[#allocation2 + $0xe0] sm:$0xff] 0.0
          %536 = vst [vmem:[#allocation2 + $0xe8] sm:$0xff] 0.0
          %537 = vst [vmem:[#allocation2 + $0xf0] sm:$0xff] 0.0
          %538 = vst [vmem:[#allocation2 + $0xf8] sm:$0xff] 0.0
        $region90: #{ngcf_conv.1} parent=81 // pred_fallthru
          _
        %v539 = vld [vmem:[#allocation2] sm:$0xff]
        %v540 = vld [vmem:[#allocation2 + $0x8] sm:$0xff]
        %v541 = vld [vmem:[#allocation2 + $0x10] sm:$0xff]
        %v542 = vld [vmem:[#allocation2 + $0x18] sm:$0xff]
        %v543 = vld [vmem:[#allocation2 + $0x20] sm:$0xff]
        %v544 = vld [vmem:[#allocation2 + $0x28] sm:$0xff]
        %v545 = vld [vmem:[#allocation2 + $0x30] sm:$0xff]
        %v546 = vld [vmem:[#allocation2 + $0x38] sm:$0xff]
        %v547 = vld [vmem:[#allocation2 + $0x40] sm:$0xff]
        %v548 = vld [vmem:[#allocation2 + $0x48] sm:$0xff]
        %v549 = vld [vmem:[#allocation2 + $0x50] sm:$0xff]
        %v550 = vld [vmem:[#allocation2 + $0x58] sm:$0xff]
        %v551 = vld [vmem:[#allocation2 + $0x60] sm:$0xff]
        %v552 = vld [vmem:[#allocation2 + $0x68] sm:$0xff]
        %v553 = vld [vmem:[#allocation2 + $0x70] sm:$0xff]
        %v554 = vld [vmem:[#allocation2 + $0x78] sm:$0xff]
        %v555 = vld [vmem:[#allocation2 + $0x80] sm:$0xff]
        %v556 = vld [vmem:[#allocation2 + $0x88] sm:$0xff]
        %v557 = vld [vmem:[#allocation2 + $0x90] sm:$0xff]
        %v558 = vld [vmem:[#allocation2 + $0x98] sm:$0xff]
        %v559 = vld [vmem:[#allocation2 + $0xa0] sm:$0xff]
        %v560 = vld [vmem:[#allocation2 + $0xa8] sm:$0xff]
        %v561 = vld [vmem:[#allocation2 + $0xb0] sm:$0xff]
        %v562 = vld [vmem:[#allocation2 + $0xb8] sm:$0xff]
        %v563 = vld [vmem:[#allocation2 + $0xc0] sm:$0xff]
        %v564 = vld [vmem:[#allocation2 + $0xc8] sm:$0xff]
        %v565 = vld [vmem:[#allocation2 + $0xd0] sm:$0xff]
        %v566 = vld [vmem:[#allocation2 + $0xd8] sm:$0xff]
        %v567 = vld [vmem:[#allocation2 + $0xe0] sm:$0xff]
        %v568 = vld [vmem:[#allocation2 + $0xe8] sm:$0xff]
        %v569 = vld [vmem:[#allocation2 + $0xf0] sm:$0xff]
        %v570 = vld [vmem:[#allocation2 + $0xf8] sm:$0xff]
        %v571 = vld [vmem:[%s443] sm:$0xff]
        %v572 = vld [vmem:[%s443 + $0x8] sm:$0xff]
        %v573 = vld [vmem:[%s443 + $0x10] sm:$0xff]
        %v574 = vld [vmem:[%s443 + $0x18] sm:$0xff]
        %v575 = vld [vmem:[%s443 + $0x20] sm:$0xff]
        %v576 = vld [vmem:[%s443 + $0x28] sm:$0xff]
        %v577 = vld [vmem:[%s443 + $0x30] sm:$0xff]
        %v578 = vld [vmem:[%s443 + $0x38] sm:$0xff]
        %v579 = vld [vmem:[%s443 + $0x40] sm:$0xff]
        %v580 = vld [vmem:[%s443 + $0x48] sm:$0xff]
        %v581 = vld [vmem:[%s443 + $0x50] sm:$0xff]
        %v582 = vld [vmem:[%s443 + $0x58] sm:$0xff]
        %v583 = vld [vmem:[%s443 + $0x60] sm:$0xff]
        %v584 = vld [vmem:[%s443 + $0x68] sm:$0xff]
        %v585 = vld [vmem:[%s443 + $0x70] sm:$0xff]
        %v586 = vld [vmem:[%s443 + $0x78] sm:$0xff]
        %v587 = vld [vmem:[%s443 + $0x80] sm:$0xff]
        %v588 = vld [vmem:[%s443 + $0x88] sm:$0xff]
        %v589 = vld [vmem:[%s443 + $0x90] sm:$0xff]
        %v590 = vld [vmem:[%s443 + $0x98] sm:$0xff]
        %v591 = vld [vmem:[%s443 + $0xa0] sm:$0xff]
        %v592 = vld [vmem:[%s443 + $0xa8] sm:$0xff]
        %v593 = vld [vmem:[%s443 + $0xb0] sm:$0xff]
        %v594 = vld [vmem:[%s443 + $0xb8] sm:$0xff]
        %v595 = vld [vmem:[%s443 + $0xc0] sm:$0xff]
        %v596 = vld [vmem:[%s443 + $0xc8] sm:$0xff]
        %v597 = vld [vmem:[%s443 + $0xd0] sm:$0xff]
        %v598 = vld [vmem:[%s443 + $0xd8] sm:$0xff]
        %v599 = vld [vmem:[%s443 + $0xe0] sm:$0xff]
        %v600 = vld [vmem:[%s443 + $0xe8] sm:$0xff]
        %v601 = vld [vmem:[%s443 + $0xf0] sm:$0xff]
        %v602 = vld [vmem:[%s443 + $0xf8] sm:$0xff]
        %v603 = vld [vmem:[%s488] sm:$0xf]
        %v604 = vld [vmem:[%s488 + $0x4] sm:$0xf]
        %v605 = vld [vmem:[%s488 + $0x8] sm:$0xf]
        %v606 = vld [vmem:[%s488 + $0xc] sm:$0xf]
        %v607 = vld [vmem:[%s488 + $0x10] sm:$0xf]
        %v608 = vld [vmem:[%s488 + $0x14] sm:$0xf]
        %v609 = vld [vmem:[%s488 + $0x18] sm:$0xf]
        %v610 = vld [vmem:[%s488 + $0x1c] sm:$0xf]
        %v611 = vld [vmem:[%s488 + $0x20] sm:$0xf]
        %v612 = vld [vmem:[%s488 + $0x24] sm:$0xf]
        %v613 = vld [vmem:[%s488 + $0x28] sm:$0xf]
        %v614 = vld [vmem:[%s488 + $0x2c] sm:$0xf]
        %v615 = vld [vmem:[%s488 + $0x30] sm:$0xf]
        %v616 = vld [vmem:[%s488 + $0x34] sm:$0xf]
        %v617 = vld [vmem:[%s488 + $0x38] sm:$0xf]
        %v618 = vld [vmem:[%s488 + $0x3c] sm:$0xf]
        %v619 = vld [vmem:[%s488 + $0x40] sm:$0xf]
        %v620 = vld [vmem:[%s488 + $0x44] sm:$0xf]
        %v621 = vld [vmem:[%s488 + $0x48] sm:$0xf]
        %v622 = vld [vmem:[%s488 + $0x4c] sm:$0xf]
        %v623 = vld [vmem:[%s488 + $0x50] sm:$0xf]
        %v624 = vld [vmem:[%s488 + $0x54] sm:$0xf]
        %v625 = vld [vmem:[%s488 + $0x58] sm:$0xf]
        %v626 = vld [vmem:[%s488 + $0x5c] sm:$0xf]
        %v627 = vld [vmem:[%s488 + $0x60] sm:$0xf]
        %v628 = vld [vmem:[%s488 + $0x64] sm:$0xf]
        %v629 = vld [vmem:[%s488 + $0x68] sm:$0xf]
        %v630 = vld [vmem:[%s488 + $0x6c] sm:$0xf]
        %v631 = vld [vmem:[%s488 + $0x70] sm:$0xf]
        %v632 = vld [vmem:[%s488 + $0x74] sm:$0xf]
        %v633 = vld [vmem:[%s488 + $0x78] sm:$0xf]
        %v634 = vld [vmem:[%s488 + $0x7c] sm:$0xf]
        %v667 = vunpack.c.l.b16 %v571
        %v668 = vunpack.c.h.b16 %v571
        %v669 = vunpack.c.l.b16 %v572
        %v670 = vunpack.c.h.b16 %v572
        %v671 = vunpack.c.l.b16 %v573
        %v672 = vunpack.c.h.b16 %v573
        %v673 = vunpack.c.l.b16 %v574
        %v674 = vunpack.c.h.b16 %v574
        %v675 = vunpack.c.l.b16 %v575
        %v676 = vunpack.c.h.b16 %v575
        %v677 = vunpack.c.l.b16 %v576
        %v678 = vunpack.c.h.b16 %v576
        %v679 = vunpack.c.l.b16 %v577
        %v680 = vunpack.c.h.b16 %v577
        %v681 = vunpack.c.l.b16 %v578
        %v682 = vunpack.c.h.b16 %v578
        %v683 = vunpack.c.l.b16 %v579
        %v684 = vunpack.c.h.b16 %v579
        %v685 = vunpack.c.l.b16 %v580
        %v686 = vunpack.c.h.b16 %v580
        %v687 = vunpack.c.l.b16 %v581
        %v688 = vunpack.c.h.b16 %v581
        %v689 = vunpack.c.l.b16 %v582
        %v690 = vunpack.c.h.b16 %v582
        %v691 = vunpack.c.l.b16 %v583
        %v692 = vunpack.c.h.b16 %v583
        %v693 = vunpack.c.l.b16 %v584
        %v694 = vunpack.c.h.b16 %v584
        %v695 = vunpack.c.l.b16 %v585
        %v696 = vunpack.c.h.b16 %v585
        %v697 = vunpack.c.l.b16 %v586
        %v698 = vunpack.c.h.b16 %v586
        %v699 = vunpack.c.l.b16 %v587
        %v700 = vunpack.c.h.b16 %v587
        %v701 = vunpack.c.l.b16 %v588
        %v702 = vunpack.c.h.b16 %v588
        %v703 = vunpack.c.l.b16 %v589
        %v704 = vunpack.c.h.b16 %v589
        %v705 = vunpack.c.l.b16 %v590
        %v706 = vunpack.c.h.b16 %v590
        %v707 = vunpack.c.l.b16 %v591
        %v708 = vunpack.c.h.b16 %v591
        %v709 = vunpack.c.l.b16 %v592
        %v710 = vunpack.c.h.b16 %v592
        %v711 = vunpack.c.l.b16 %v593
        %v712 = vunpack.c.h.b16 %v593
        %v713 = vunpack.c.l.b16 %v594
        %v714 = vunpack.c.h.b16 %v594
        %v715 = vunpack.c.l.b16 %v595
        %v716 = vunpack.c.h.b16 %v595
        %v717 = vunpack.c.l.b16 %v596
        %v718 = vunpack.c.h.b16 %v596
        %v719 = vunpack.c.l.b16 %v597
        %v720 = vunpack.c.h.b16 %v597
        %v721 = vunpack.c.l.b16 %v598
        %v722 = vunpack.c.h.b16 %v598
        %v723 = vunpack.c.l.b16 %v599
        %v724 = vunpack.c.h.b16 %v599
        %v725 = vunpack.c.l.b16 %v600
        %v726 = vunpack.c.h.b16 %v600
        %v727 = vunpack.c.l.b16 %v601
        %v728 = vunpack.c.h.b16 %v601
        %v729 = vunpack.c.l.b16 %v602
        %v730 = vunpack.c.h.b16 %v602
        %v731 = vpack.c.b16 %v669, %v667
        %v732 = vpack.c.b16 %v670, %v668
        %v733 = vpack.c.b16 %v673, %v671
        %v734 = vpack.c.b16 %v674, %v672
        %v735 = vpack.c.b16 %v677, %v675
        %v736 = vpack.c.b16 %v678, %v676
        %v737 = vpack.c.b16 %v681, %v679
        %v738 = vpack.c.b16 %v682, %v680
        %v739 = vpack.c.b16 %v685, %v683
        %v740 = vpack.c.b16 %v686, %v684
        %v741 = vpack.c.b16 %v689, %v687
        %v742 = vpack.c.b16 %v690, %v688
        %v743 = vpack.c.b16 %v693, %v691
        %v744 = vpack.c.b16 %v694, %v692
        %v745 = vpack.c.b16 %v697, %v695
        %v746 = vpack.c.b16 %v698, %v696
        %v747 = vpack.c.b16 %v701, %v699
        %v748 = vpack.c.b16 %v702, %v700
        %v749 = vpack.c.b16 %v705, %v703
        %v750 = vpack.c.b16 %v706, %v704
        %v751 = vpack.c.b16 %v709, %v707
        %v752 = vpack.c.b16 %v710, %v708
        %v753 = vpack.c.b16 %v713, %v711
        %v754 = vpack.c.b16 %v714, %v712
        %v755 = vpack.c.b16 %v717, %v715
        %v756 = vpack.c.b16 %v718, %v716
        %v757 = vpack.c.b16 %v721, %v719
        %v758 = vpack.c.b16 %v722, %v720
        %v759 = vpack.c.b16 %v725, %v723
        %v760 = vpack.c.b16 %v726, %v724
        %v761 = vpack.c.b16 %v729, %v727
        %v762 = vpack.c.b16 %v730, %v728
        %v827 = vunpack.c.l.b16 %v603
        %v828 = vunpack.c.l.b16 %v604
        %v829 = vunpack.c.l.b16 %v605
        %v830 = vunpack.c.l.b16 %v606
        %v831 = vunpack.c.l.b16 %v607
        %v832 = vunpack.c.l.b16 %v608
        %v833 = vunpack.c.l.b16 %v609
        %v834 = vunpack.c.l.b16 %v610
        %v835 = vunpack.c.l.b16 %v611
        %v836 = vunpack.c.l.b16 %v612
        %v837 = vunpack.c.l.b16 %v613
        %v838 = vunpack.c.l.b16 %v614
        %v839 = vunpack.c.l.b16 %v615
        %v840 = vunpack.c.l.b16 %v616
        %v841 = vunpack.c.l.b16 %v617
        %v842 = vunpack.c.l.b16 %v618
        %v843 = vunpack.c.l.b16 %v619
        %v844 = vunpack.c.l.b16 %v620
        %v845 = vunpack.c.l.b16 %v621
        %v846 = vunpack.c.l.b16 %v622
        %v847 = vunpack.c.l.b16 %v623
        %v848 = vunpack.c.l.b16 %v624
        %v849 = vunpack.c.l.b16 %v625
        %v850 = vunpack.c.l.b16 %v626
        %v851 = vunpack.c.l.b16 %v627
        %v852 = vunpack.c.l.b16 %v628
        %v853 = vunpack.c.l.b16 %v629
        %v854 = vunpack.c.l.b16 %v630
        %v855 = vunpack.c.l.b16 %v631
        %v856 = vunpack.c.l.b16 %v632
        %v857 = vunpack.c.l.b16 %v633
        %v858 = vunpack.c.l.b16 %v634
        %v859 = vpack.c.b16 %v828, %v827
        %v860 = vpack.c.b16 %v830, %v829
        %v861 = vpack.c.b16 %v832, %v831
        %v862 = vpack.c.b16 %v834, %v833
        %v863 = vpack.c.b16 %v836, %v835
        %v864 = vpack.c.b16 %v838, %v837
        %v865 = vpack.c.b16 %v840, %v839
        %v866 = vpack.c.b16 %v842, %v841
        %v867 = vpack.c.b16 %v844, %v843
        %v868 = vpack.c.b16 %v846, %v845
        %v869 = vpack.c.b16 %v848, %v847
        %v870 = vpack.c.b16 %v850, %v849
        %v871 = vpack.c.b16 %v852, %v851
        %v872 = vpack.c.b16 %v854, %v853
        %v873 = vpack.c.b16 %v856, %v855
        %v874 = vpack.c.b16 %v858, %v857
        %891 = vmatprep.subr.bf16.mxu0 0
        %892 = vmatpush1.bf16.msra.mxu0 %v859
        %893 = vmatprep.subr.bf16.mxu0 0
        %894 = vmatpush1.bf16.msra.mxu0 %v860
        %895 = vmatprep.subr.bf16.mxu0 0
        %896 = vmatpush1.bf16.msra.mxu0 %v861
        %897 = vmatprep.subr.bf16.mxu0 0
        %898 = vmatpush1.bf16.msra.mxu0 %v862
        %899 = vmatprep.subr.bf16.mxu0 0
        %900 = vmatpush1.bf16.msra.mxu0 %v863
        %901 = vmatprep.subr.bf16.mxu0 0
        %902 = vmatpush1.bf16.msra.mxu0 %v864
        %903 = vmatprep.subr.bf16.mxu0 0
        %904 = vmatpush1.bf16.msra.mxu0 %v865
        %905 = vmatprep.subr.bf16.mxu0 0
        %906 = vmatpush1.bf16.msra.mxu0 %v866
        %907 = vmatprep.subr.bf16.mxu0 0
        %908 = vmatpush1.bf16.msra.mxu0 %v867
        %909 = vmatprep.subr.bf16.mxu0 0
        %910 = vmatpush1.bf16.msra.mxu0 %v868
        %911 = vmatprep.subr.bf16.mxu0 0
        %912 = vmatpush1.bf16.msra.mxu0 %v869
        %913 = vmatprep.subr.bf16.mxu0 0
        %914 = vmatpush1.bf16.msra.mxu0 %v870
        %915 = vmatprep.subr.bf16.mxu0 0
        %916 = vmatpush1.bf16.msra.mxu0 %v871
        %917 = vmatprep.subr.bf16.mxu0 0
        %918 = vmatpush1.bf16.msra.mxu0 %v872
        %919 = vmatprep.subr.bf16.mxu0 0
        %920 = vmatpush1.bf16.msra.mxu0 %v873
        %921 = vmatprep.subr.bf16.mxu0 0
        %922 = vmatpush1.bf16.msra.mxu0 %v874
        %923 = vmatprep.mubr.bf16.mxu0 %v732
        %924 = vmatmul.mubr.bf16.gmra.mrb[0].mxu0 %v731
        %v925 = vpop.f32.mrb[0].mxu0
        %v926 = vadd.f32 0.0, %v925
        %v927 = vpop.f32.mrb[0].mxu0
        %v928 = vpop.f32.mrb[0].mxu0
        %v929 = vadd.f32 0.0, %v928
        %v930 = vpop.f32.mrb[0].mxu0
        %931 = vmatprep.mubr.bf16.mxu0 %v734
        %932 = vmatmul.mubr.bf16.gmra.mrb[0].mxu0 %v733
        %v933 = vpop.f32.mrb[0].mxu0
        %v934 = vadd.f32 0.0, %v933
        %v935 = vpop.f32.mrb[0].mxu0
        %v936 = vpop.f32.mrb[0].mxu0
        %v937 = vadd.f32 0.0, %v936
        %v938 = vpop.f32.mrb[0].mxu0
        %939 = vmatprep.mubr.bf16.mxu0 %v736
        %940 = vmatmul.mubr.bf16.gmra.mrb[0].mxu0 %v735
        %v941 = vpop.f32.mrb[0].mxu0
        %v942 = vadd.f32 0.0, %v941
        %v943 = vpop.f32.mrb[0].mxu0
        %v944 = vpop.f32.mrb[0].mxu0
        %v945 = vadd.f32 0.0, %v944
        %v946 = vpop.f32.mrb[0].mxu0
        %947 = vmatprep.mubr.bf16.mxu0 %v738
        %948 = vmatmul.mubr.bf16.gmra.mrb[0].mxu0 %v737
        %v949 = vpop.f32.mrb[0].mxu0
        %v950 = vadd.f32 0.0, %v949
        %v951 = vpop.f32.mrb[0].mxu0
        %v952 = vpop.f32.mrb[0].mxu0
        %v953 = vadd.f32 0.0, %v952
        %v954 = vpop.f32.mrb[0].mxu0
        %955 = vmatprep.mubr.bf16.mxu0 %v740
        %956 = vmatmul.mubr.bf16.gmra.mrb[0].mxu0 %v739
        %v957 = vpop.f32.mrb[0].mxu0
        %v958 = vadd.f32 0.0, %v957
        %v959 = vpop.f32.mrb[0].mxu0
        %v960 = vpop.f32.mrb[0].mxu0
        %v961 = vadd.f32 0.0, %v960
        %v962 = vpop.f32.mrb[0].mxu0
        %963 = vmatprep.mubr.bf16.mxu0 %v742
        %964 = vmatmul.mubr.bf16.gmra.mrb[0].mxu0 %v741
        %v965 = vpop.f32.mrb[0].mxu0
        %v966 = vadd.f32 0.0, %v965
        %v967 = vpop.f32.mrb[0].mxu0
        %v968 = vpop.f32.mrb[0].mxu0
        %v969 = vadd.f32 0.0, %v968
        %v970 = vpop.f32.mrb[0].mxu0
        %971 = vmatprep.mubr.bf16.mxu0 %v744
        %972 = vmatmul.mubr.bf16.gmra.mrb[0].mxu0 %v743
        %v973 = vpop.f32.mrb[0].mxu0
        %v974 = vadd.f32 0.0, %v973
        %v975 = vpop.f32.mrb[0].mxu0
        %v976 = vpop.f32.mrb[0].mxu0
        %v977 = vadd.f32 0.0, %v976
        %v978 = vpop.f32.mrb[0].mxu0
        %979 = vmatprep.mubr.bf16.mxu0 %v746
        %980 = vmatmul.mubr.bf16.gmra.mrb[0].mxu0 %v745
        %v981 = vpop.f32.mrb[0].mxu0
        %v982 = vadd.f32 0.0, %v981
        %v983 = vpop.f32.mrb[0].mxu0
        %v984 = vpop.f32.mrb[0].mxu0
        %v985 = vadd.f32 0.0, %v984
        %v986 = vpop.f32.mrb[0].mxu0
        %987 = vmatprep.mubr.bf16.mxu0 %v748
        %988 = vmatmul.mubr.bf16.gmra.mrb[0].mxu0 %v747
        %v989 = vpop.f32.mrb[0].mxu0
        %v990 = vadd.f32 0.0, %v989
        %v991 = vpop.f32.mrb[0].mxu0
        %v992 = vpop.f32.mrb[0].mxu0
        %v993 = vadd.f32 0.0, %v992
        %v994 = vpop.f32.mrb[0].mxu0
        %995 = vmatprep.mubr.bf16.mxu0 %v750
        %996 = vmatmul.mubr.bf16.gmra.mrb[0].mxu0 %v749
        %v997 = vpop.f32.mrb[0].mxu0
        %v998 = vadd.f32 0.0, %v997
        %v999 = vpop.f32.mrb[0].mxu0
        %v1000 = vpop.f32.mrb[0].mxu0
        %v1001 = vadd.f32 0.0, %v1000
        %v1002 = vpop.f32.mrb[0].mxu0
        %1003 = vmatprep.mubr.bf16.mxu0 %v752
        %1004 = vmatmul.mubr.bf16.gmra.mrb[0].mxu0 %v751
        %v1005 = vpop.f32.mrb[0].mxu0
        %v1006 = vadd.f32 0.0, %v1005
        %v1007 = vpop.f32.mrb[0].mxu0
        %v1008 = vpop.f32.mrb[0].mxu0
        %v1009 = vadd.f32 0.0, %v1008
        %v1010 = vpop.f32.mrb[0].mxu0
        %1011 = vmatprep.mubr.bf16.mxu0 %v754
        %1012 = vmatmul.mubr.bf16.gmra.mrb[0].mxu0 %v753
        %v1013 = vpop.f32.mrb[0].mxu0
        %v1014 = vadd.f32 0.0, %v1013
        %v1015 = vpop.f32.mrb[0].mxu0
        %v1016 = vpop.f32.mrb[0].mxu0
        %v1017 = vadd.f32 0.0, %v1016
        %v1018 = vpop.f32.mrb[0].mxu0
        %1019 = vmatprep.mubr.bf16.mxu0 %v756
        %1020 = vmatmul.mubr.bf16.gmra.mrb[0].mxu0 %v755
        %v1021 = vpop.f32.mrb[0].mxu0
        %v1022 = vadd.f32 0.0, %v1021
        %v1023 = vpop.f32.mrb[0].mxu0
        %v1024 = vpop.f32.mrb[0].mxu0
        %v1025 = vadd.f32 0.0, %v1024
        %v1026 = vpop.f32.mrb[0].mxu0
        %1027 = vmatprep.mubr.bf16.mxu0 %v758
        %1028 = vmatmul.mubr.bf16.gmra.mrb[0].mxu0 %v757
        %v1029 = vpop.f32.mrb[0].mxu0
        %v1030 = vadd.f32 0.0, %v1029
        %v1031 = vpop.f32.mrb[0].mxu0
        %v1032 = vpop.f32.mrb[0].mxu0
        %v1033 = vadd.f32 0.0, %v1032
        %v1034 = vpop.f32.mrb[0].mxu0
        %1035 = vmatprep.mubr.bf16.mxu0 %v760
        %1036 = vmatmul.mubr.bf16.gmra.mrb[0].mxu0 %v759
        %v1037 = vpop.f32.mrb[0].mxu0
        %v1038 = vadd.f32 0.0, %v1037
        %v1039 = vpop.f32.mrb[0].mxu0
        %v1040 = vpop.f32.mrb[0].mxu0
        %v1041 = vadd.f32 0.0, %v1040
        %v1042 = vpop.f32.mrb[0].mxu0
        %1043 = vmatprep.mubr.bf16.mxu0 %v762
        %1044 = vmatmul.mubr.bf16.gmra.mrb[0].mxu0 %v761
        %v1045 = vpop.f32.mrb[0].mxu0
        %v1046 = vadd.f32 0.0, %v1045
        %v1047 = vpop.f32.mrb[0].mxu0
        %v1048 = vpop.f32.mrb[0].mxu0
        %v1049 = vadd.f32 0.0, %v1048
        %v1050 = vpop.f32.mrb[0].mxu0
        %1051 = vdwg.mxu0
        %v1052 = vadd.f32 %v539, %v926
        %v1053 = vadd.f32 %v540, %v929
        %v1054 = vadd.f32 %v541, %v934
        %v1055 = vadd.f32 %v542, %v937
        %v1056 = vadd.f32 %v543, %v942
        %v1057 = vadd.f32 %v544, %v945
        %v1058 = vadd.f32 %v545, %v950
        %v1059 = vadd.f32 %v546, %v953
        %v1060 = vadd.f32 %v547, %v958
        %v1061 = vadd.f32 %v548, %v961
        %v1062 = vadd.f32 %v549, %v966
        %v1063 = vadd.f32 %v550, %v969
        %v1064 = vadd.f32 %v551, %v974
        %v1065 = vadd.f32 %v552, %v977
        %v1066 = vadd.f32 %v553, %v982
        %v1067 = vadd.f32 %v554, %v985
        %v1068 = vadd.f32 %v555, %v990
        %v1069 = vadd.f32 %v556, %v993
        %v1070 = vadd.f32 %v557, %v998
        %v1071 = vadd.f32 %v558, %v1001
        %v1072 = vadd.f32 %v559, %v1006
        %v1073 = vadd.f32 %v560, %v1009
        %v1074 = vadd.f32 %v561, %v1014
        %v1075 = vadd.f32 %v562, %v1017
        %v1076 = vadd.f32 %v563, %v1022
        %v1077 = vadd.f32 %v564, %v1025
        %v1078 = vadd.f32 %v565, %v1030
        %v1079 = vadd.f32 %v566, %v1033
        %v1080 = vadd.f32 %v567, %v1038
        %v1081 = vadd.f32 %v568, %v1041
        %v1082 = vadd.f32 %v569, %v1046
        %v1083 = vadd.f32 %v570, %v1049
        %1084 = vst [vmem:[#allocation2] sm:$0xff] %v1052
        %1085 = vst [vmem:[#allocation2 + $0x8] sm:$0xff] %v1053
        %1086 = vst [vmem:[#allocation2 + $0x10] sm:$0xff] %v1054
        %1087 = vst [vmem:[#allocation2 + $0x18] sm:$0xff] %v1055
        %1088 = vst [vmem:[#allocation2 + $0x20] sm:$0xff] %v1056
        %1089 = vst [vmem:[#allocation2 + $0x28] sm:$0xff] %v1057
        %1090 = vst [vmem:[#allocation2 + $0x30] sm:$0xff] %v1058
        %1091 = vst [vmem:[#allocation2 + $0x38] sm:$0xff] %v1059
        %1092 = vst [vmem:[#allocation2 + $0x40] sm:$0xff] %v1060
        %1093 = vst [vmem:[#allocation2 + $0x48] sm:$0xff] %v1061
        %1094 = vst [vmem:[#allocation2 + $0x50] sm:$0xff] %v1062
        %1095 = vst [vmem:[#allocation2 + $0x58] sm:$0xff] %v1063
        %1096 = vst [vmem:[#allocation2 + $0x60] sm:$0xff] %v1064
        %1097 = vst [vmem:[#allocation2 + $0x68] sm:$0xff] %v1065
        %1098 = vst [vmem:[#allocation2 + $0x70] sm:$0xff] %v1066
        %1099 = vst [vmem:[#allocation2 + $0x78] sm:$0xff] %v1067
        %1100 = vst [vmem:[#allocation2 + $0x80] sm:$0xff] %v1068
        %1101 = vst [vmem:[#allocation2 + $0x88] sm:$0xff] %v1069
        %1102 = vst [vmem:[#allocation2 + $0x90] sm:$0xff] %v1070
        %1103 = vst [vmem:[#allocation2 + $0x98] sm:$0xff] %v1071
        %1104 = vst [vmem:[#allocation2 + $0xa0] sm:$0xff] %v1072
        %1105 = vst [vmem:[#allocation2 + $0xa8] sm:$0xff] %v1073
        %1106 = vst [vmem:[#allocation2 + $0xb0] sm:$0xff] %v1074
        %1107 = vst [vmem:[#allocation2 + $0xb8] sm:$0xff] %v1075
        %1108 = vst [vmem:[#allocation2 + $0xc0] sm:$0xff] %v1076
        %1109 = vst [vmem:[#allocation2 + $0xc8] sm:$0xff] %v1077
        %1110 = vst [vmem:[#allocation2 + $0xd0] sm:$0xff] %v1078
        %1111 = vst [vmem:[#allocation2 + $0xd8] sm:$0xff] %v1079
        %1112 = vst [vmem:[#allocation2 + $0xe0] sm:$0xff] %v1080
        %1113 = vst [vmem:[#allocation2 + $0xe8] sm:$0xff] %v1081
        %1114 = vst [vmem:[#allocation2 + $0xf0] sm:$0xff] %v1082
        %1115 = vst [vmem:[#allocation2 + $0xf8] sm:$0xff] %v1083
        %p1116 = scmp.eq.s32.totalorder %s23, 1
        // Predicated region
        $region91: #{ngcf_conv.1} parent=81 // pred_check
          %p1117 = pneg %p1116
        $region92: #{ngcf_conv.1} parent=81 // pred_check_branch
          %1119 = sbr.rel (%p1117) target = $region94
        $region93: #{ngcf_conv.1} parent=81 // pred_region
          %v1120 = vld [vmem:[#allocation2] sm:$0xff]
          %v1121 = vld [vmem:[#allocation2 + $0x8] sm:$0xff]
          %v1122 = vld [vmem:[#allocation2 + $0x10] sm:$0xff]
          %v1123 = vld [vmem:[#allocation2 + $0x18] sm:$0xff]
          %v1124 = vld [vmem:[#allocation2 + $0x20] sm:$0xff]
          %v1125 = vld [vmem:[#allocation2 + $0x28] sm:$0xff]
          %v1126 = vld [vmem:[#allocation2 + $0x30] sm:$0xff]
          %v1127 = vld [vmem:[#allocation2 + $0x38] sm:$0xff]
          %v1128 = vld [vmem:[#allocation2 + $0x40] sm:$0xff]
          %v1129 = vld [vmem:[#allocation2 + $0x48] sm:$0xff]
          %v1130 = vld [vmem:[#allocation2 + $0x50] sm:$0xff]
          %v1131 = vld [vmem:[#allocation2 + $0x58] sm:$0xff]
          %v1132 = vld [vmem:[#allocation2 + $0x60] sm:$0xff]
          %v1133 = vld [vmem:[#allocation2 + $0x68] sm:$0xff]
          %v1134 = vld [vmem:[#allocation2 + $0x70] sm:$0xff]
          %v1135 = vld [vmem:[#allocation2 + $0x78] sm:$0xff]
          %v1136 = vld [vmem:[#allocation2 + $0x80] sm:$0xff]
          %v1137 = vld [vmem:[#allocation2 + $0x88] sm:$0xff]
          %v1138 = vld [vmem:[#allocation2 + $0x90] sm:$0xff]
          %v1139 = vld [vmem:[#allocation2 + $0x98] sm:$0xff]
          %v1140 = vld [vmem:[#allocation2 + $0xa0] sm:$0xff]
          %v1141 = vld [vmem:[#allocation2 + $0xa8] sm:$0xff]
          %v1142 = vld [vmem:[#allocation2 + $0xb0] sm:$0xff]
          %v1143 = vld [vmem:[#allocation2 + $0xb8] sm:$0xff]
          %v1144 = vld [vmem:[#allocation2 + $0xc0] sm:$0xff]
          %v1145 = vld [vmem:[#allocation2 + $0xc8] sm:$0xff]
          %v1146 = vld [vmem:[#allocation2 + $0xd0] sm:$0xff]
          %v1147 = vld [vmem:[#allocation2 + $0xd8] sm:$0xff]
          %v1148 = vld [vmem:[#allocation2 + $0xe0] sm:$0xff]
          %v1149 = vld [vmem:[#allocation2 + $0xe8] sm:$0xff]
          %v1150 = vld [vmem:[#allocation2 + $0xf0] sm:$0xff]
          %v1151 = vld [vmem:[#allocation2 + $0xf8] sm:$0xff]
          %v1152 = vld [vmem:[%s494] sm:$0xff]
          %v1153 = vld [vmem:[%s494 + $0x8] sm:$0xff]
          %v1154 = vld [vmem:[%s494 + $0x10] sm:$0xff]
          %v1155 = vld [vmem:[%s494 + $0x18] sm:$0xff]
          %v1156 = vld [vmem:[%s494 + $0x20] sm:$0xff]
          %v1157 = vld [vmem:[%s494 + $0x28] sm:$0xff]
          %v1158 = vld [vmem:[%s494 + $0x30] sm:$0xff]
          %v1159 = vld [vmem:[%s494 + $0x38] sm:$0xff]
          %v1160 = vld [vmem:[%s494 + $0x40] sm:$0xff]
          %v1161 = vld [vmem:[%s494 + $0x48] sm:$0xff]
          %v1162 = vld [vmem:[%s494 + $0x50] sm:$0xff]
          %v1163 = vld [vmem:[%s494 + $0x58] sm:$0xff]
          %v1164 = vld [vmem:[%s494 + $0x60] sm:$0xff]
          %v1165 = vld [vmem:[%s494 + $0x68] sm:$0xff]
          %v1166 = vld [vmem:[%s494 + $0x70] sm:$0xff]
          %v1167 = vld [vmem:[%s494 + $0x78] sm:$0xff]
          %v1168 = vld [vmem:[%s494 + $0x80] sm:$0xff]
          %v1169 = vld [vmem:[%s494 + $0x88] sm:$0xff]
          %v1170 = vld [vmem:[%s494 + $0x90] sm:$0xff]
          %v1171 = vld [vmem:[%s494 + $0x98] sm:$0xff]
          %v1172 = vld [vmem:[%s494 + $0xa0] sm:$0xff]
          %v1173 = vld [vmem:[%s494 + $0xa8] sm:$0xff]
          %v1174 = vld [vmem:[%s494 + $0xb0] sm:$0xff]
          %v1175 = vld [vmem:[%s494 + $0xb8] sm:$0xff]
          %v1176 = vld [vmem:[%s494 + $0xc0] sm:$0xff]
          %v1177 = vld [vmem:[%s494 + $0xc8] sm:$0xff]
          %v1178 = vld [vmem:[%s494 + $0xd0] sm:$0xff]
          %v1179 = vld [vmem:[%s494 + $0xd8] sm:$0xff]
          %v1180 = vld [vmem:[%s494 + $0xe0] sm:$0xff]
          %v1181 = vld [vmem:[%s494 + $0xe8] sm:$0xff]
          %v1182 = vld [vmem:[%s494 + $0xf0] sm:$0xff]
          %v1183 = vld [vmem:[%s494 + $0xf8] sm:$0xff]
          %v1184 = vld [vmem:[%s3] sm:$0xff]
          %v1185 = vld [vmem:[%s3 + $0x8] sm:$0xff]
          %v1186 = vld [vmem:[%s3 + $0x10] sm:$0xff]
          %v1187 = vld [vmem:[%s3 + $0x18] sm:$0xff]
          %v1188 = vld [vmem:[%s3 + $0x20] sm:$0xff]
          %v1189 = vld [vmem:[%s3 + $0x28] sm:$0xff]
          %v1190 = vld [vmem:[%s3 + $0x30] sm:$0xff]
          %v1191 = vld [vmem:[%s3 + $0x38] sm:$0xff]
          %v1192 = vld [vmem:[%s3 + $0x40] sm:$0xff]
          %v1193 = vld [vmem:[%s3 + $0x48] sm:$0xff]
          %v1194 = vld [vmem:[%s3 + $0x50] sm:$0xff]
          %v1195 = vld [vmem:[%s3 + $0x58] sm:$0xff]
          %v1196 = vld [vmem:[%s3 + $0x60] sm:$0xff]
          %v1197 = vld [vmem:[%s3 + $0x68] sm:$0xff]
          %v1198 = vld [vmem:[%s3 + $0x70] sm:$0xff]
          %v1199 = vld [vmem:[%s3 + $0x78] sm:$0xff]
          %v1200 = vld [vmem:[%s4] sm:$0x1]
          %v1202 = vlaneseq
          %v1203 = vshrl.u32 %v1202, 7
          %v1204 = vsub.s32 0, %v1203
          %v1205 = vrot.slane %v1200, %v1204
          %1207 = vmatprep.subr.mxu0 0.0
          %1208 = vmatpush1.msra.mxu0 %v1184
          %1209 = vmatprep.subr.mxu0 0.0
          %1210 = vmatpush1.msra.mxu0 %v1185
          %1211 = vmatprep.subr.mxu0 0.0
          %1212 = vmatpush1.msra.mxu0 %v1186
          %1213 = vmatprep.subr.mxu0 0.0
          %1214 = vmatpush1.msra.mxu0 %v1187
          %1215 = vmatprep.subr.mxu0 0.0
          %1216 = vmatpush1.msra.mxu0 %v1188
          %1217 = vmatprep.subr.mxu0 0.0
          %1218 = vmatpush1.msra.mxu0 %v1189
          %1219 = vmatprep.subr.mxu0 0.0
          %1220 = vmatpush1.msra.mxu0 %v1190
          %1221 = vmatprep.subr.mxu0 0.0
          %1222 = vmatpush1.msra.mxu0 %v1191
          %1223 = vmatprep.subr.mxu0 0.0
          %1224 = vmatpush1.msra.mxu0 %v1192
          %1225 = vmatprep.subr.mxu0 0.0
          %1226 = vmatpush1.msra.mxu0 %v1193
          %1227 = vmatprep.subr.mxu0 0.0
          %1228 = vmatpush1.msra.mxu0 %v1194
          %1229 = vmatprep.subr.mxu0 0.0
          %1230 = vmatpush1.msra.mxu0 %v1195
          %1231 = vmatprep.subr.mxu0 0.0
          %1232 = vmatpush1.msra.mxu0 %v1196
          %1233 = vmatprep.subr.mxu0 0.0
          %1234 = vmatpush1.msra.mxu0 %v1197
          %1235 = vmatprep.subr.mxu0 0.0
          %1236 = vmatpush1.msra.mxu0 %v1198
          %1237 = vmatprep.subr.mxu0 0.0
          %1238 = vmatpush1.msra.mxu0 %v1199
          %1239 = vmatprep.subr.mxu0 0.0
          %1240 = vmatpush1.msra.mxu0 0.0
          %1241 = vmatprep.subr.mxu0 0.0
          %1242 = vmatpush1.msra.mxu0 0.0
          %1243 = vmatprep.subr.mxu0 0.0
          %1244 = vmatpush1.msra.mxu0 0.0
          %1245 = vmatprep.subr.mxu0 0.0
          %1246 = vmatpush1.msra.mxu0 0.0
          %1247 = vmatprep.subr.mxu0 0.0
          %1248 = vmatpush1.msra.mxu0 0.0
          %1249 = vmatprep.subr.mxu0 0.0
          %1250 = vmatpush1.msra.mxu0 0.0
          %1251 = vmatprep.subr.mxu0 0.0
          %1252 = vmatpush1.msra.mxu0 0.0
          %1253 = vmatprep.subr.mxu0 0.0
          %1254 = vmatpush1.msra.mxu0 0.0
          %1255 = vmatprep.subr.mxu0 0.0
          %1256 = vmatpush1.msra.mxu0 0.0
          %1257 = vmatprep.subr.mxu0 0.0
          %1258 = vmatpush1.msra.mxu0 0.0
          %1259 = vmatprep.subr.mxu0 0.0
          %1260 = vmatpush1.msra.mxu0 0.0
          %1261 = vmatprep.subr.mxu0 0.0
          %1262 = vmatpush1.msra.mxu0 0.0
          %1263 = vmatprep.subr.mxu0 0.0
          %1264 = vmatpush1.msra.mxu0 0.0
          %1265 = vmatprep.subr.mxu0 0.0
          %1266 = vmatpush1.msra.mxu0 0.0
          %1267 = vmatprep.subr.mxu0 0.0
          %1268 = vmatpush1.msra.mxu0 0.0
          %1269 = vmatprep.subr.mxu0 0.0
          %1270 = vmatpush1.msra.mxu0 0.0
          %1271 = vmatprep.mubr.f32.mxu0 0.0
          %1272 = vmatmul.mubr.f32.gmra.mrb[0].mxu0 %v1120
          %v1273 = vpop.f32.mrb[0].mxu0
          %v1274 = vadd.f32 %v1205, %v1273
          %v1275 = vpop.f32.mrb[0].mxu0
          %1276 = vmatprep.mubr.f32.mxu0 0.0
          %1277 = vmatmul.mubr.f32.gmra.mrb[0].mxu0 %v1121
          %v1278 = vpop.f32.mrb[0].mxu0
          %v1279 = vadd.f32 %v1205, %v1278
          %v1280 = vpop.f32.mrb[0].mxu0
          %1281 = vmatprep.mubr.f32.mxu0 0.0
          %1282 = vmatmul.mubr.f32.gmra.mrb[0].mxu0 %v1122
          %v1283 = vpop.f32.mrb[0].mxu0
          %v1284 = vadd.f32 %v1205, %v1283
          %v1285 = vpop.f32.mrb[0].mxu0
          %1286 = vmatprep.mubr.f32.mxu0 0.0
          %1287 = vmatmul.mubr.f32.gmra.mrb[0].mxu0 %v1123
          %v1288 = vpop.f32.mrb[0].mxu0
          %v1289 = vadd.f32 %v1205, %v1288
          %v1290 = vpop.f32.mrb[0].mxu0
          %1291 = vmatprep.mubr.f32.mxu0 0.0
          %1292 = vmatmul.mubr.f32.gmra.mrb[0].mxu0 %v1124
          %v1293 = vpop.f32.mrb[0].mxu0
          %v1294 = vadd.f32 %v1205, %v1293
          %v1295 = vpop.f32.mrb[0].mxu0
          %1296 = vmatprep.mubr.f32.mxu0 0.0
          %1297 = vmatmul.mubr.f32.gmra.mrb[0].mxu0 %v1125
          %v1298 = vpop.f32.mrb[0].mxu0
          %v1299 = vadd.f32 %v1205, %v1298
          %v1300 = vpop.f32.mrb[0].mxu0
          %1301 = vmatprep.mubr.f32.mxu0 0.0
          %1302 = vmatmul.mubr.f32.gmra.mrb[0].mxu0 %v1126
          %v1303 = vpop.f32.mrb[0].mxu0
          %v1304 = vadd.f32 %v1205, %v1303
          %v1305 = vpop.f32.mrb[0].mxu0
          %1306 = vmatprep.mubr.f32.mxu0 0.0
          %1307 = vmatmul.mubr.f32.gmra.mrb[0].mxu0 %v1127
          %v1308 = vpop.f32.mrb[0].mxu0
          %v1309 = vadd.f32 %v1205, %v1308
          %v1310 = vpop.f32.mrb[0].mxu0
          %1311 = vmatprep.mubr.f32.mxu0 0.0
          %1312 = vmatmul.mubr.f32.gmra.mrb[0].mxu0 %v1128
          %v1313 = vpop.f32.mrb[0].mxu0
          %v1314 = vadd.f32 %v1205, %v1313
          %v1315 = vpop.f32.mrb[0].mxu0
          %1316 = vmatprep.mubr.f32.mxu0 0.0
          %1317 = vmatmul.mubr.f32.gmra.mrb[0].mxu0 %v1129
          %v1318 = vpop.f32.mrb[0].mxu0
          %v1319 = vadd.f32 %v1205, %v1318
          %v1320 = vpop.f32.mrb[0].mxu0
          %1321 = vmatprep.mubr.f32.mxu0 0.0
          %1322 = vmatmul.mubr.f32.gmra.mrb[0].mxu0 %v1130
          %v1323 = vpop.f32.mrb[0].mxu0
          %v1324 = vadd.f32 %v1205, %v1323
          %v1325 = vpop.f32.mrb[0].mxu0
          %1326 = vmatprep.mubr.f32.mxu0 0.0
          %1327 = vmatmul.mubr.f32.gmra.mrb[0].mxu0 %v1131
          %v1328 = vpop.f32.mrb[0].mxu0
          %v1329 = vadd.f32 %v1205, %v1328
          %v1330 = vpop.f32.mrb[0].mxu0
          %1331 = vmatprep.mubr.f32.mxu0 0.0
          %1332 = vmatmul.mubr.f32.gmra.mrb[0].mxu0 %v1132
          %v1333 = vpop.f32.mrb[0].mxu0
          %v1334 = vadd.f32 %v1205, %v1333
          %v1335 = vpop.f32.mrb[0].mxu0
          %1336 = vmatprep.mubr.f32.mxu0 0.0
          %1337 = vmatmul.mubr.f32.gmra.mrb[0].mxu0 %v1133
          %v1338 = vpop.f32.mrb[0].mxu0
          %v1339 = vadd.f32 %v1205, %v1338
          %v1340 = vpop.f32.mrb[0].mxu0
          %1341 = vmatprep.mubr.f32.mxu0 0.0
          %1342 = vmatmul.mubr.f32.gmra.mrb[0].mxu0 %v1134
          %v1343 = vpop.f32.mrb[0].mxu0
          %v1344 = vadd.f32 %v1205, %v1343
          %v1345 = vpop.f32.mrb[0].mxu0
          %1346 = vmatprep.mubr.f32.mxu0 0.0
          %1347 = vmatmul.mubr.f32.gmra.mrb[0].mxu0 %v1135
          %v1348 = vpop.f32.mrb[0].mxu0
          %v1349 = vadd.f32 %v1205, %v1348
          %v1350 = vpop.f32.mrb[0].mxu0
          %1351 = vmatprep.mubr.f32.mxu0 0.0
          %1352 = vmatmul.mubr.f32.gmra.mrb[0].mxu0 %v1136
          %v1353 = vpop.f32.mrb[0].mxu0
          %v1354 = vadd.f32 %v1205, %v1353
          %v1355 = vpop.f32.mrb[0].mxu0
          %1356 = vmatprep.mubr.f32.mxu0 0.0
          %1357 = vmatmul.mubr.f32.gmra.mrb[0].mxu0 %v1137
          %v1358 = vpop.f32.mrb[0].mxu0
          %v1359 = vadd.f32 %v1205, %v1358
          %v1360 = vpop.f32.mrb[0].mxu0
          %1361 = vmatprep.mubr.f32.mxu0 0.0
          %1362 = vmatmul.mubr.f32.gmra.mrb[0].mxu0 %v1138
          %v1363 = vpop.f32.mrb[0].mxu0
          %v1364 = vadd.f32 %v1205, %v1363
          %v1365 = vpop.f32.mrb[0].mxu0
          %1366 = vmatprep.mubr.f32.mxu0 0.0
          %1367 = vmatmul.mubr.f32.gmra.mrb[0].mxu0 %v1139
          %v1368 = vpop.f32.mrb[0].mxu0
          %v1369 = vadd.f32 %v1205, %v1368
          %v1370 = vpop.f32.mrb[0].mxu0
          %1371 = vmatprep.mubr.f32.mxu0 0.0
          %1372 = vmatmul.mubr.f32.gmra.mrb[0].mxu0 %v1140
          %v1373 = vpop.f32.mrb[0].mxu0
          %v1374 = vadd.f32 %v1205, %v1373
          %v1375 = vpop.f32.mrb[0].mxu0
          %1376 = vmatprep.mubr.f32.mxu0 0.0
          %1377 = vmatmul.mubr.f32.gmra.mrb[0].mxu0 %v1141
          %v1378 = vpop.f32.mrb[0].mxu0
          %v1379 = vadd.f32 %v1205, %v1378
          %v1380 = vpop.f32.mrb[0].mxu0
          %1381 = vmatprep.mubr.f32.mxu0 0.0
          %1382 = vmatmul.mubr.f32.gmra.mrb[0].mxu0 %v1142
          %v1383 = vpop.f32.mrb[0].mxu0
          %v1384 = vadd.f32 %v1205, %v1383
          %v1385 = vpop.f32.mrb[0].mxu0
          %1386 = vmatprep.mubr.f32.mxu0 0.0
          %1387 = vmatmul.mubr.f32.gmra.mrb[0].mxu0 %v1143
          %v1388 = vpop.f32.mrb[0].mxu0
          %v1389 = vadd.f32 %v1205, %v1388
          %v1390 = vpop.f32.mrb[0].mxu0
          %1391 = vmatprep.mubr.f32.mxu0 0.0
          %1392 = vmatmul.mubr.f32.gmra.mrb[0].mxu0 %v1144
          %v1393 = vpop.f32.mrb[0].mxu0
          %v1394 = vadd.f32 %v1205, %v1393
          %v1395 = vpop.f32.mrb[0].mxu0
          %1396 = vmatprep.mubr.f32.mxu0 0.0
          %1397 = vmatmul.mubr.f32.gmra.mrb[0].mxu0 %v1145
          %v1398 = vpop.f32.mrb[0].mxu0
          %v1399 = vadd.f32 %v1205, %v1398
          %v1400 = vpop.f32.mrb[0].mxu0
          %1401 = vmatprep.mubr.f32.mxu0 0.0
          %1402 = vmatmul.mubr.f32.gmra.mrb[0].mxu0 %v1146
          %v1403 = vpop.f32.mrb[0].mxu0
          %v1404 = vadd.f32 %v1205, %v1403
          %v1405 = vpop.f32.mrb[0].mxu0
          %1406 = vmatprep.mubr.f32.mxu0 0.0
          %1407 = vmatmul.mubr.f32.gmra.mrb[0].mxu0 %v1147
          %v1408 = vpop.f32.mrb[0].mxu0
          %v1409 = vadd.f32 %v1205, %v1408
          %v1410 = vpop.f32.mrb[0].mxu0
          %1411 = vmatprep.mubr.f32.mxu0 0.0
          %1412 = vmatmul.mubr.f32.gmra.mrb[0].mxu0 %v1148
          %v1413 = vpop.f32.mrb[0].mxu0
          %v1414 = vadd.f32 %v1205, %v1413
          %v1415 = vpop.f32.mrb[0].mxu0
          %1416 = vmatprep.mubr.f32.mxu0 0.0
          %1417 = vmatmul.mubr.f32.gmra.mrb[0].mxu0 %v1149
          %v1418 = vpop.f32.mrb[0].mxu0
          %v1419 = vadd.f32 %v1205, %v1418
          %v1420 = vpop.f32.mrb[0].mxu0
          %1421 = vmatprep.mubr.f32.mxu0 0.0
          %1422 = vmatmul.mubr.f32.gmra.mrb[0].mxu0 %v1150
          %v1423 = vpop.f32.mrb[0].mxu0
          %v1424 = vadd.f32 %v1205, %v1423
          %v1425 = vpop.f32.mrb[0].mxu0
          %1426 = vmatprep.mubr.f32.mxu0 0.0
          %1427 = vmatmul.mubr.f32.gmra.mrb[0].mxu0 %v1151
          %v1428 = vpop.f32.mrb[0].mxu0
          %v1429 = vadd.f32 %v1205, %v1428
          %v1430 = vpop.f32.mrb[0].mxu0
          %1431 = vdwg.mxu0
          %v1432 = vmul.f32 %v1120, %v1152
          %v1433 = vmul.f32 %v1121, %v1153
          %v1434 = vmul.f32 %v1122, %v1154
          %v1435 = vmul.f32 %v1123, %v1155
          %v1436 = vmul.f32 %v1124, %v1156
          %v1437 = vmul.f32 %v1125, %v1157
          %v1438 = vmul.f32 %v1126, %v1158
          %v1439 = vmul.f32 %v1127, %v1159
          %v1440 = vmul.f32 %v1128, %v1160
          %v1441 = vmul.f32 %v1129, %v1161
          %v1442 = vmul.f32 %v1130, %v1162
          %v1443 = vmul.f32 %v1131, %v1163
          %v1444 = vmul.f32 %v1132, %v1164
          %v1445 = vmul.f32 %v1133, %v1165
          %v1446 = vmul.f32 %v1134, %v1166
          %v1447 = vmul.f32 %v1135, %v1167
          %v1448 = vmul.f32 %v1136, %v1168
          %v1449 = vmul.f32 %v1137, %v1169
          %v1450 = vmul.f32 %v1138, %v1170
          %v1451 = vmul.f32 %v1139, %v1171
          %v1452 = vmul.f32 %v1140, %v1172
          %v1453 = vmul.f32 %v1141, %v1173
          %v1454 = vmul.f32 %v1142, %v1174
          %v1455 = vmul.f32 %v1143, %v1175
          %v1456 = vmul.f32 %v1144, %v1176
          %v1457 = vmul.f32 %v1145, %v1177
          %v1458 = vmul.f32 %v1146, %v1178
          %v1459 = vmul.f32 %v1147, %v1179
          %v1460 = vmul.f32 %v1148, %v1180
          %v1461 = vmul.f32 %v1149, %v1181
          %v1462 = vmul.f32 %v1150, %v1182
          %v1463 = vmul.f32 %v1151, %v1183
          %v1464 = vld [vmem:[%s5] sm:$0xff]
          %v1465 = vld [vmem:[%s5 + $0x8] sm:$0xff]
          %v1466 = vld [vmem:[%s5 + $0x10] sm:$0xff]
          %v1467 = vld [vmem:[%s5 + $0x18] sm:$0xff]
          %v1468 = vld [vmem:[%s5 + $0x20] sm:$0xff]
          %v1469 = vld [vmem:[%s5 + $0x28] sm:$0xff]
          %v1470 = vld [vmem:[%s5 + $0x30] sm:$0xff]
          %v1471 = vld [vmem:[%s5 + $0x38] sm:$0xff]
          %v1472 = vld [vmem:[%s5 + $0x40] sm:$0xff]
          %v1473 = vld [vmem:[%s5 + $0x48] sm:$0xff]
          %v1474 = vld [vmem:[%s5 + $0x50] sm:$0xff]
          %v1475 = vld [vmem:[%s5 + $0x58] sm:$0xff]
          %v1476 = vld [vmem:[%s5 + $0x60] sm:$0xff]
          %v1477 = vld [vmem:[%s5 + $0x68] sm:$0xff]
          %v1478 = vld [vmem:[%s5 + $0x70] sm:$0xff]
          %v1479 = vld [vmem:[%s5 + $0x78] sm:$0xff]
          %v1480 = vld [vmem:[%s6] sm:$0x1]
          %v1482 = vlaneseq
          %v1483 = vshrl.u32 %v1482, 7
          %v1484 = vsub.s32 0, %v1483
          %v1485 = vrot.slane %v1480, %v1484
          %1487 = vmatprep.subr.mxu0 0.0
          %1488 = vmatpush1.msra.mxu0 %v1464
          %1489 = vmatprep.subr.mxu0 0.0
          %1490 = vmatpush1.msra.mxu0 %v1465
          %1491 = vmatprep.subr.mxu0 0.0
          %1492 = vmatpush1.msra.mxu0 %v1466
          %1493 = vmatprep.subr.mxu0 0.0
          %1494 = vmatpush1.msra.mxu0 %v1467
          %1495 = vmatprep.subr.mxu0 0.0
          %1496 = vmatpush1.msra.mxu0 %v1468
          %1497 = vmatprep.subr.mxu0 0.0
          %1498 = vmatpush1.msra.mxu0 %v1469
          %1499 = vmatprep.subr.mxu0 0.0
          %1500 = vmatpush1.msra.mxu0 %v1470
          %1501 = vmatprep.subr.mxu0 0.0
          %1502 = vmatpush1.msra.mxu0 %v1471
          %1503 = vmatprep.subr.mxu0 0.0
          %1504 = vmatpush1.msra.mxu0 %v1472
          %1505 = vmatprep.subr.mxu0 0.0
          %1506 = vmatpush1.msra.mxu0 %v1473
          %1507 = vmatprep.subr.mxu0 0.0
          %1508 = vmatpush1.msra.mxu0 %v1474
          %1509 = vmatprep.subr.mxu0 0.0
          %1510 = vmatpush1.msra.mxu0 %v1475
          %1511 = vmatprep.subr.mxu0 0.0
          %1512 = vmatpush1.msra.mxu0 %v1476
          %1513 = vmatprep.subr.mxu0 0.0
          %1514 = vmatpush1.msra.mxu0 %v1477
          %1515 = vmatprep.subr.mxu0 0.0
          %1516 = vmatpush1.msra.mxu0 %v1478
          %1517 = vmatprep.subr.mxu0 0.0
          %1518 = vmatpush1.msra.mxu0 %v1479
          %1519 = vmatprep.subr.mxu0 0.0
          %1520 = vmatpush1.msra.mxu0 0.0
          %1521 = vmatprep.subr.mxu0 0.0
          %1522 = vmatpush1.msra.mxu0 0.0
          %1523 = vmatprep.subr.mxu0 0.0
          %1524 = vmatpush1.msra.mxu0 0.0
          %1525 = vmatprep.subr.mxu0 0.0
          %1526 = vmatpush1.msra.mxu0 0.0
          %1527 = vmatprep.subr.mxu0 0.0
          %1528 = vmatpush1.msra.mxu0 0.0
          %1529 = vmatprep.subr.mxu0 0.0
          %1530 = vmatpush1.msra.mxu0 0.0
          %1531 = vmatprep.subr.mxu0 0.0
          %1532 = vmatpush1.msra.mxu0 0.0
          %1533 = vmatprep.subr.mxu0 0.0
          %1534 = vmatpush1.msra.mxu0 0.0
          %1535 = vmatprep.subr.mxu0 0.0
          %1536 = vmatpush1.msra.mxu0 0.0
          %1537 = vmatprep.subr.mxu0 0.0
          %1538 = vmatpush1.msra.mxu0 0.0
          %1539 = vmatprep.subr.mxu0 0.0
          %1540 = vmatpush1.msra.mxu0 0.0
          %1541 = vmatprep.subr.mxu0 0.0
          %1542 = vmatpush1.msra.mxu0 0.0
          %1543 = vmatprep.subr.mxu0 0.0
          %1544 = vmatpush1.msra.mxu0 0.0
          %1545 = vmatprep.subr.mxu0 0.0
          %1546 = vmatpush1.msra.mxu0 0.0
          %1547 = vmatprep.subr.mxu0 0.0
          %1548 = vmatpush1.msra.mxu0 0.0
          %1549 = vmatprep.subr.mxu0 0.0
          %1550 = vmatpush1.msra.mxu0 0.0
          %1551 = vmatprep.mubr.f32.mxu0 0.0
          %1552 = vmatmul.mubr.f32.gmra.mrb[0].mxu0 %v1432
          %v1553 = vpop.f32.mrb[0].mxu0
          %v1554 = vadd.f32 %v1485, %v1553
          %v1555 = vpop.f32.mrb[0].mxu0
          %1556 = vmatprep.mubr.f32.mxu0 0.0
          %1557 = vmatmul.mubr.f32.gmra.mrb[0].mxu0 %v1433
          %v1558 = vpop.f32.mrb[0].mxu0
          %v1559 = vadd.f32 %v1485, %v1558
          %v1560 = vpop.f32.mrb[0].mxu0
          %1561 = vmatprep.mubr.f32.mxu0 0.0
          %1562 = vmatmul.mubr.f32.gmra.mrb[0].mxu0 %v1434
          %v1563 = vpop.f32.mrb[0].mxu0
          %v1564 = vadd.f32 %v1485, %v1563
          %v1565 = vpop.f32.mrb[0].mxu0
          %1566 = vmatprep.mubr.f32.mxu0 0.0
          %1567 = vmatmul.mubr.f32.gmra.mrb[0].mxu0 %v1435
          %v1568 = vpop.f32.mrb[0].mxu0
          %v1569 = vadd.f32 %v1485, %v1568
          %v1570 = vpop.f32.mrb[0].mxu0
          %1571 = vmatprep.mubr.f32.mxu0 0.0
          %1572 = vmatmul.mubr.f32.gmra.mrb[0].mxu0 %v1436
          %v1573 = vpop.f32.mrb[0].mxu0
          %v1574 = vadd.f32 %v1485, %v1573
          %v1575 = vpop.f32.mrb[0].mxu0
          %1576 = vmatprep.mubr.f32.mxu0 0.0
          %1577 = vmatmul.mubr.f32.gmra.mrb[0].mxu0 %v1437
          %v1578 = vpop.f32.mrb[0].mxu0
          %v1579 = vadd.f32 %v1485, %v1578
          %v1580 = vpop.f32.mrb[0].mxu0
          %1581 = vmatprep.mubr.f32.mxu0 0.0
          %1582 = vmatmul.mubr.f32.gmra.mrb[0].mxu0 %v1438
          %v1583 = vpop.f32.mrb[0].mxu0
          %v1584 = vadd.f32 %v1485, %v1583
          %v1585 = vpop.f32.mrb[0].mxu0
          %1586 = vmatprep.mubr.f32.mxu0 0.0
          %1587 = vmatmul.mubr.f32.gmra.mrb[0].mxu0 %v1439
          %v1588 = vpop.f32.mrb[0].mxu0
          %v1589 = vadd.f32 %v1485, %v1588
          %v1590 = vpop.f32.mrb[0].mxu0
          %1591 = vmatprep.mubr.f32.mxu0 0.0
          %1592 = vmatmul.mubr.f32.gmra.mrb[0].mxu0 %v1440
          %v1593 = vpop.f32.mrb[0].mxu0
          %v1594 = vadd.f32 %v1485, %v1593
          %v1595 = vpop.f32.mrb[0].mxu0
          %1596 = vmatprep.mubr.f32.mxu0 0.0
          %1597 = vmatmul.mubr.f32.gmra.mrb[0].mxu0 %v1441
          %v1598 = vpop.f32.mrb[0].mxu0
          %v1599 = vadd.f32 %v1485, %v1598
          %v1600 = vpop.f32.mrb[0].mxu0
          %1601 = vmatprep.mubr.f32.mxu0 0.0
          %1602 = vmatmul.mubr.f32.gmra.mrb[0].mxu0 %v1442
          %v1603 = vpop.f32.mrb[0].mxu0
          %v1604 = vadd.f32 %v1485, %v1603
          %v1605 = vpop.f32.mrb[0].mxu0
          %1606 = vmatprep.mubr.f32.mxu0 0.0
          %1607 = vmatmul.mubr.f32.gmra.mrb[0].mxu0 %v1443
          %v1608 = vpop.f32.mrb[0].mxu0
          %v1609 = vadd.f32 %v1485, %v1608
          %v1610 = vpop.f32.mrb[0].mxu0
          %1611 = vmatprep.mubr.f32.mxu0 0.0
          %1612 = vmatmul.mubr.f32.gmra.mrb[0].mxu0 %v1444
          %v1613 = vpop.f32.mrb[0].mxu0
          %v1614 = vadd.f32 %v1485, %v1613
          %v1615 = vpop.f32.mrb[0].mxu0
          %1616 = vmatprep.mubr.f32.mxu0 0.0
          %1617 = vmatmul.mubr.f32.gmra.mrb[0].mxu0 %v1445
          %v1618 = vpop.f32.mrb[0].mxu0
          %v1619 = vadd.f32 %v1485, %v1618
          %v1620 = vpop.f32.mrb[0].mxu0
          %1621 = vmatprep.mubr.f32.mxu0 0.0
          %1622 = vmatmul.mubr.f32.gmra.mrb[0].mxu0 %v1446
          %v1623 = vpop.f32.mrb[0].mxu0
          %v1624 = vadd.f32 %v1485, %v1623
          %v1625 = vpop.f32.mrb[0].mxu0
          %1626 = vmatprep.mubr.f32.mxu0 0.0
          %1627 = vmatmul.mubr.f32.gmra.mrb[0].mxu0 %v1447
          %v1628 = vpop.f32.mrb[0].mxu0
          %v1629 = vadd.f32 %v1485, %v1628
          %v1630 = vpop.f32.mrb[0].mxu0
          %1631 = vmatprep.mubr.f32.mxu0 0.0
          %1632 = vmatmul.mubr.f32.gmra.mrb[0].mxu0 %v1448
          %v1633 = vpop.f32.mrb[0].mxu0
          %v1634 = vadd.f32 %v1485, %v1633
          %v1635 = vpop.f32.mrb[0].mxu0
          %1636 = vmatprep.mubr.f32.mxu0 0.0
          %1637 = vmatmul.mubr.f32.gmra.mrb[0].mxu0 %v1449
          %v1638 = vpop.f32.mrb[0].mxu0
          %v1639 = vadd.f32 %v1485, %v1638
          %v1640 = vpop.f32.mrb[0].mxu0
          %1641 = vmatprep.mubr.f32.mxu0 0.0
          %1642 = vmatmul.mubr.f32.gmra.mrb[0].mxu0 %v1450
          %v1643 = vpop.f32.mrb[0].mxu0
          %v1644 = vadd.f32 %v1485, %v1643
          %v1645 = vpop.f32.mrb[0].mxu0
          %1646 = vmatprep.mubr.f32.mxu0 0.0
          %1647 = vmatmul.mubr.f32.gmra.mrb[0].mxu0 %v1451
          %v1648 = vpop.f32.mrb[0].mxu0
          %v1649 = vadd.f32 %v1485, %v1648
          %v1650 = vpop.f32.mrb[0].mxu0
          %1651 = vmatprep.mubr.f32.mxu0 0.0
          %1652 = vmatmul.mubr.f32.gmra.mrb[0].mxu0 %v1452
          %v1653 = vpop.f32.mrb[0].mxu0
          %v1654 = vadd.f32 %v1485, %v1653
          %v1655 = vpop.f32.mrb[0].mxu0
          %1656 = vmatprep.mubr.f32.mxu0 0.0
          %1657 = vmatmul.mubr.f32.gmra.mrb[0].mxu0 %v1453
          %v1658 = vpop.f32.mrb[0].mxu0
          %v1659 = vadd.f32 %v1485, %v1658
          %v1660 = vpop.f32.mrb[0].mxu0
          %1661 = vmatprep.mubr.f32.mxu0 0.0
          %1662 = vmatmul.mubr.f32.gmra.mrb[0].mxu0 %v1454
          %v1663 = vpop.f32.mrb[0].mxu0
          %v1664 = vadd.f32 %v1485, %v1663
          %v1665 = vpop.f32.mrb[0].mxu0
          %1666 = vmatprep.mubr.f32.mxu0 0.0
          %1667 = vmatmul.mubr.f32.gmra.mrb[0].mxu0 %v1455
          %v1668 = vpop.f32.mrb[0].mxu0
          %v1669 = vadd.f32 %v1485, %v1668
          %v1670 = vpop.f32.mrb[0].mxu0
          %1671 = vmatprep.mubr.f32.mxu0 0.0
          %1672 = vmatmul.mubr.f32.gmra.mrb[0].mxu0 %v1456
          %v1673 = vpop.f32.mrb[0].mxu0
          %v1674 = vadd.f32 %v1485, %v1673
          %v1675 = vpop.f32.mrb[0].mxu0
          %1676 = vmatprep.mubr.f32.mxu0 0.0
          %1677 = vmatmul.mubr.f32.gmra.mrb[0].mxu0 %v1457
          %v1678 = vpop.f32.mrb[0].mxu0
          %v1679 = vadd.f32 %v1485, %v1678
          %v1680 = vpop.f32.mrb[0].mxu0
          %1681 = vmatprep.mubr.f32.mxu0 0.0
          %1682 = vmatmul.mubr.f32.gmra.mrb[0].mxu0 %v1458
          %v1683 = vpop.f32.mrb[0].mxu0
          %v1684 = vadd.f32 %v1485, %v1683
          %v1685 = vpop.f32.mrb[0].mxu0
          %1686 = vmatprep.mubr.f32.mxu0 0.0
          %1687 = vmatmul.mubr.f32.gmra.mrb[0].mxu0 %v1459
          %v1688 = vpop.f32.mrb[0].mxu0
          %v1689 = vadd.f32 %v1485, %v1688
          %v1690 = vpop.f32.mrb[0].mxu0
          %1691 = vmatprep.mubr.f32.mxu0 0.0
          %1692 = vmatmul.mubr.f32.gmra.mrb[0].mxu0 %v1460
          %v1693 = vpop.f32.mrb[0].mxu0
          %v1694 = vadd.f32 %v1485, %v1693
          %v1695 = vpop.f32.mrb[0].mxu0
          %1696 = vmatprep.mubr.f32.mxu0 0.0
          %1697 = vmatmul.mubr.f32.gmra.mrb[0].mxu0 %v1461
          %v1698 = vpop.f32.mrb[0].mxu0
          %v1699 = vadd.f32 %v1485, %v1698
          %v1700 = vpop.f32.mrb[0].mxu0
          %1701 = vmatprep.mubr.f32.mxu0 0.0
          %1702 = vmatmul.mubr.f32.gmra.mrb[0].mxu0 %v1462
          %v1703 = vpop.f32.mrb[0].mxu0
          %v1704 = vadd.f32 %v1485, %v1703
          %v1705 = vpop.f32.mrb[0].mxu0
          %1706 = vmatprep.mubr.f32.mxu0 0.0
          %1707 = vmatmul.mubr.f32.gmra.mrb[0].mxu0 %v1463
          %v1708 = vpop.f32.mrb[0].mxu0
          %v1709 = vadd.f32 %v1485, %v1708
          %v1710 = vpop.f32.mrb[0].mxu0
          %1711 = vdwg.mxu0
          %vm1712 = vcmp.ge.f32.partialorder %v1274, 0.0
          %vm1713 = vcmp.ge.f32.partialorder %v1279, 0.0
          %vm1714 = vcmp.ge.f32.partialorder %v1284, 0.0
          %vm1715 = vcmp.ge.f32.partialorder %v1289, 0.0
          %vm1716 = vcmp.ge.f32.partialorder %v1294, 0.0
          %vm1717 = vcmp.ge.f32.partialorder %v1299, 0.0
          %vm1718 = vcmp.ge.f32.partialorder %v1304, 0.0
          %vm1719 = vcmp.ge.f32.partialorder %v1309, 0.0
          %vm1720 = vcmp.ge.f32.partialorder %v1314, 0.0
          %vm1721 = vcmp.ge.f32.partialorder %v1319, 0.0
          %vm1722 = vcmp.ge.f32.partialorder %v1324, 0.0
          %vm1723 = vcmp.ge.f32.partialorder %v1329, 0.0
          %vm1724 = vcmp.ge.f32.partialorder %v1334, 0.0
          %vm1725 = vcmp.ge.f32.partialorder %v1339, 0.0
          %vm1726 = vcmp.ge.f32.partialorder %v1344, 0.0
          %vm1727 = vcmp.ge.f32.partialorder %v1349, 0.0
          %vm1728 = vcmp.ge.f32.partialorder %v1354, 0.0
          %vm1729 = vcmp.ge.f32.partialorder %v1359, 0.0
          %vm1730 = vcmp.ge.f32.partialorder %v1364, 0.0
          %vm1731 = vcmp.ge.f32.partialorder %v1369, 0.0
          %vm1732 = vcmp.ge.f32.partialorder %v1374, 0.0
          %vm1733 = vcmp.ge.f32.partialorder %v1379, 0.0
          %vm1734 = vcmp.ge.f32.partialorder %v1384, 0.0
          %vm1735 = vcmp.ge.f32.partialorder %v1389, 0.0
          %vm1736 = vcmp.ge.f32.partialorder %v1394, 0.0
          %vm1737 = vcmp.ge.f32.partialorder %v1399, 0.0
          %vm1738 = vcmp.ge.f32.partialorder %v1404, 0.0
          %vm1739 = vcmp.ge.f32.partialorder %v1409, 0.0
          %vm1740 = vcmp.ge.f32.partialorder %v1414, 0.0
          %vm1741 = vcmp.ge.f32.partialorder %v1419, 0.0
          %vm1742 = vcmp.ge.f32.partialorder %v1424, 0.0
          %vm1743 = vcmp.ge.f32.partialorder %v1429, 0.0
          %v1744 = vmul.f32 %v1274, 0.2
          %v1745 = vmul.f32 %v1279, 0.2
          %v1746 = vmul.f32 %v1284, 0.2
          %v1747 = vmul.f32 %v1289, 0.2
          %v1748 = vmul.f32 %v1294, 0.2
          %v1749 = vmul.f32 %v1299, 0.2
          %v1750 = vmul.f32 %v1304, 0.2
          %v1751 = vmul.f32 %v1309, 0.2
          %v1752 = vmul.f32 %v1314, 0.2
          %v1753 = vmul.f32 %v1319, 0.2
          %v1754 = vmul.f32 %v1324, 0.2
          %v1755 = vmul.f32 %v1329, 0.2
          %v1756 = vmul.f32 %v1334, 0.2
          %v1757 = vmul.f32 %v1339, 0.2
          %v1758 = vmul.f32 %v1344, 0.2
          %v1759 = vmul.f32 %v1349, 0.2
          %v1760 = vmul.f32 %v1354, 0.2
          %v1761 = vmul.f32 %v1359, 0.2
          %v1762 = vmul.f32 %v1364, 0.2
          %v1763 = vmul.f32 %v1369, 0.2
          %v1764 = vmul.f32 %v1374, 0.2
          %v1765 = vmul.f32 %v1379, 0.2
          %v1766 = vmul.f32 %v1384, 0.2
          %v1767 = vmul.f32 %v1389, 0.2
          %v1768 = vmul.f32 %v1394, 0.2
          %v1769 = vmul.f32 %v1399, 0.2
          %v1770 = vmul.f32 %v1404, 0.2
          %v1771 = vmul.f32 %v1409, 0.2
          %v1772 = vmul.f32 %v1414, 0.2
          %v1773 = vmul.f32 %v1419, 0.2
          %v1774 = vmul.f32 %v1424, 0.2
          %v1775 = vmul.f32 %v1429, 0.2
          %v1776 = vsel %vm1712, %v1274, %v1744
          %v1777 = vsel %vm1713, %v1279, %v1745
          %v1778 = vsel %vm1714, %v1284, %v1746
          %v1779 = vsel %vm1715, %v1289, %v1747
          %v1780 = vsel %vm1716, %v1294, %v1748
          %v1781 = vsel %vm1717, %v1299, %v1749
          %v1782 = vsel %vm1718, %v1304, %v1750
          %v1783 = vsel %vm1719, %v1309, %v1751
          %v1784 = vsel %vm1720, %v1314, %v1752
          %v1785 = vsel %vm1721, %v1319, %v1753
          %v1786 = vsel %vm1722, %v1324, %v1754
          %v1787 = vsel %vm1723, %v1329, %v1755
          %v1788 = vsel %vm1724, %v1334, %v1756
          %v1789 = vsel %vm1725, %v1339, %v1757
          %v1790 = vsel %vm1726, %v1344, %v1758
          %v1791 = vsel %vm1727, %v1349, %v1759
          %v1792 = vsel %vm1728, %v1354, %v1760
          %v1793 = vsel %vm1729, %v1359, %v1761
          %v1794 = vsel %vm1730, %v1364, %v1762
          %v1795 = vsel %vm1731, %v1369, %v1763
          %v1796 = vsel %vm1732, %v1374, %v1764
          %v1797 = vsel %vm1733, %v1379, %v1765
          %v1798 = vsel %vm1734, %v1384, %v1766
          %v1799 = vsel %vm1735, %v1389, %v1767
          %v1800 = vsel %vm1736, %v1394, %v1768
          %v1801 = vsel %vm1737, %v1399, %v1769
          %v1802 = vsel %vm1738, %v1404, %v1770
          %v1803 = vsel %vm1739, %v1409, %v1771
          %v1804 = vsel %vm1740, %v1414, %v1772
          %v1805 = vsel %vm1741, %v1419, %v1773
          %v1806 = vsel %vm1742, %v1424, %v1774
          %v1807 = vsel %vm1743, %v1429, %v1775
          %vm1808 = vcmp.ge.f32.partialorder %v1554, 0.0
          %vm1809 = vcmp.ge.f32.partialorder %v1559, 0.0
          %vm1810 = vcmp.ge.f32.partialorder %v1564, 0.0
          %vm1811 = vcmp.ge.f32.partialorder %v1569, 0.0
          %vm1812 = vcmp.ge.f32.partialorder %v1574, 0.0
          %vm1813 = vcmp.ge.f32.partialorder %v1579, 0.0
          %vm1814 = vcmp.ge.f32.partialorder %v1584, 0.0
          %vm1815 = vcmp.ge.f32.partialorder %v1589, 0.0
          %vm1816 = vcmp.ge.f32.partialorder %v1594, 0.0
          %vm1817 = vcmp.ge.f32.partialorder %v1599, 0.0
          %vm1818 = vcmp.ge.f32.partialorder %v1604, 0.0
          %vm1819 = vcmp.ge.f32.partialorder %v1609, 0.0
          %vm1820 = vcmp.ge.f32.partialorder %v1614, 0.0
          %vm1821 = vcmp.ge.f32.partialorder %v1619, 0.0
          %vm1822 = vcmp.ge.f32.partialorder %v1624, 0.0
          %vm1823 = vcmp.ge.f32.partialorder %v1629, 0.0
          %vm1824 = vcmp.ge.f32.partialorder %v1634, 0.0
          %vm1825 = vcmp.ge.f32.partialorder %v1639, 0.0
          %vm1826 = vcmp.ge.f32.partialorder %v1644, 0.0
          %vm1827 = vcmp.ge.f32.partialorder %v1649, 0.0
          %vm1828 = vcmp.ge.f32.partialorder %v1654, 0.0
          %vm1829 = vcmp.ge.f32.partialorder %v1659, 0.0
          %vm1830 = vcmp.ge.f32.partialorder %v1664, 0.0
          %vm1831 = vcmp.ge.f32.partialorder %v1669, 0.0
          %vm1832 = vcmp.ge.f32.partialorder %v1674, 0.0
          %vm1833 = vcmp.ge.f32.partialorder %v1679, 0.0
          %vm1834 = vcmp.ge.f32.partialorder %v1684, 0.0
          %vm1835 = vcmp.ge.f32.partialorder %v1689, 0.0
          %vm1836 = vcmp.ge.f32.partialorder %v1694, 0.0
          %vm1837 = vcmp.ge.f32.partialorder %v1699, 0.0
          %vm1838 = vcmp.ge.f32.partialorder %v1704, 0.0
          %vm1839 = vcmp.ge.f32.partialorder %v1709, 0.0
          %v1840 = vmul.f32 %v1554, 0.2
          %v1841 = vmul.f32 %v1559, 0.2
          %v1842 = vmul.f32 %v1564, 0.2
          %v1843 = vmul.f32 %v1569, 0.2
          %v1844 = vmul.f32 %v1574, 0.2
          %v1845 = vmul.f32 %v1579, 0.2
          %v1846 = vmul.f32 %v1584, 0.2
          %v1847 = vmul.f32 %v1589, 0.2
          %v1848 = vmul.f32 %v1594, 0.2
          %v1849 = vmul.f32 %v1599, 0.2
          %v1850 = vmul.f32 %v1604, 0.2
          %v1851 = vmul.f32 %v1609, 0.2
          %v1852 = vmul.f32 %v1614, 0.2
          %v1853 = vmul.f32 %v1619, 0.2
          %v1854 = vmul.f32 %v1624, 0.2
          %v1855 = vmul.f32 %v1629, 0.2
          %v1856 = vmul.f32 %v1634, 0.2
          %v1857 = vmul.f32 %v1639, 0.2
          %v1858 = vmul.f32 %v1644, 0.2
          %v1859 = vmul.f32 %v1649, 0.2
          %v1860 = vmul.f32 %v1654, 0.2
          %v1861 = vmul.f32 %v1659, 0.2
          %v1862 = vmul.f32 %v1664, 0.2
          %v1863 = vmul.f32 %v1669, 0.2
          %v1864 = vmul.f32 %v1674, 0.2
          %v1865 = vmul.f32 %v1679, 0.2
          %v1866 = vmul.f32 %v1684, 0.2
          %v1867 = vmul.f32 %v1689, 0.2
          %v1868 = vmul.f32 %v1694, 0.2
          %v1869 = vmul.f32 %v1699, 0.2
          %v1870 = vmul.f32 %v1704, 0.2
          %v1871 = vmul.f32 %v1709, 0.2
          %v1872 = vsel %vm1808, %v1554, %v1840
          %v1873 = vsel %vm1809, %v1559, %v1841
          %v1874 = vsel %vm1810, %v1564, %v1842
          %v1875 = vsel %vm1811, %v1569, %v1843
          %v1876 = vsel %vm1812, %v1574, %v1844
          %v1877 = vsel %vm1813, %v1579, %v1845
          %v1878 = vsel %vm1814, %v1584, %v1846
          %v1879 = vsel %vm1815, %v1589, %v1847
          %v1880 = vsel %vm1816, %v1594, %v1848
          %v1881 = vsel %vm1817, %v1599, %v1849
          %v1882 = vsel %vm1818, %v1604, %v1850
          %v1883 = vsel %vm1819, %v1609, %v1851
          %v1884 = vsel %vm1820, %v1614, %v1852
          %v1885 = vsel %vm1821, %v1619, %v1853
          %v1886 = vsel %vm1822, %v1624, %v1854
          %v1887 = vsel %vm1823, %v1629, %v1855
          %v1888 = vsel %vm1824, %v1634, %v1856
          %v1889 = vsel %vm1825, %v1639, %v1857
          %v1890 = vsel %vm1826, %v1644, %v1858
          %v1891 = vsel %vm1827, %v1649, %v1859
          %v1892 = vsel %vm1828, %v1654, %v1860
          %v1893 = vsel %vm1829, %v1659, %v1861
          %v1894 = vsel %vm1830, %v1664, %v1862
          %v1895 = vsel %vm1831, %v1669, %v1863
          %v1896 = vsel %vm1832, %v1674, %v1864
          %v1897 = vsel %vm1833, %v1679, %v1865
          %v1898 = vsel %vm1834, %v1684, %v1866
          %v1899 = vsel %vm1835, %v1689, %v1867
          %v1900 = vsel %vm1836, %v1694, %v1868
          %v1901 = vsel %vm1837, %v1699, %v1869
          %v1902 = vsel %vm1838, %v1704, %v1870
          %v1903 = vsel %vm1839, %v1709, %v1871
          %v1904 = vadd.f32 %v1776, %v1872
          %v1905 = vadd.f32 %v1777, %v1873
          %v1906 = vadd.f32 %v1778, %v1874
          %v1907 = vadd.f32 %v1779, %v1875
          %v1908 = vadd.f32 %v1780, %v1876
          %v1909 = vadd.f32 %v1781, %v1877
          %v1910 = vadd.f32 %v1782, %v1878
          %v1911 = vadd.f32 %v1783, %v1879
          %v1912 = vadd.f32 %v1784, %v1880
          %v1913 = vadd.f32 %v1785, %v1881
          %v1914 = vadd.f32 %v1786, %v1882
          %v1915 = vadd.f32 %v1787, %v1883
          %v1916 = vadd.f32 %v1788, %v1884
          %v1917 = vadd.f32 %v1789, %v1885
          %v1918 = vadd.f32 %v1790, %v1886
          %v1919 = vadd.f32 %v1791, %v1887
          %v1920 = vadd.f32 %v1792, %v1888
          %v1921 = vadd.f32 %v1793, %v1889
          %v1922 = vadd.f32 %v1794, %v1890
          %v1923 = vadd.f32 %v1795, %v1891
          %v1924 = vadd.f32 %v1796, %v1892
          %v1925 = vadd.f32 %v1797, %v1893
          %v1926 = vadd.f32 %v1798, %v1894
          %v1927 = vadd.f32 %v1799, %v1895
          %v1928 = vadd.f32 %v1800, %v1896
          %v1929 = vadd.f32 %v1801, %v1897
          %v1930 = vadd.f32 %v1802, %v1898
          %v1931 = vadd.f32 %v1803, %v1899
          %v1932 = vadd.f32 %v1804, %v1900
          %v1933 = vadd.f32 %v1805, %v1901
          %v1934 = vadd.f32 %v1806, %v1902
          %v1935 = vadd.f32 %v1807, %v1903
          %1936 = vst [vmem:[%s500] sm:$0xff] %v1904
          %1937 = vst [vmem:[%s500 + $0x8] sm:$0xff] %v1905
          %1938 = vst [vmem:[%s500 + $0x10] sm:$0xff] %v1906
          %1939 = vst [vmem:[%s500 + $0x18] sm:$0xff] %v1907
          %1940 = vst [vmem:[%s500 + $0x20] sm:$0xff] %v1908
          %1941 = vst [vmem:[%s500 + $0x28] sm:$0xff] %v1909
          %1942 = vst [vmem:[%s500 + $0x30] sm:$0xff] %v1910
          %1943 = vst [vmem:[%s500 + $0x38] sm:$0xff] %v1911
          %1944 = vst [vmem:[%s500 + $0x40] sm:$0xff] %v1912
          %1945 = vst [vmem:[%s500 + $0x48] sm:$0xff] %v1913
          %1946 = vst [vmem:[%s500 + $0x50] sm:$0xff] %v1914
          %1947 = vst [vmem:[%s500 + $0x58] sm:$0xff] %v1915
          %1948 = vst [vmem:[%s500 + $0x60] sm:$0xff] %v1916
          %1949 = vst [vmem:[%s500 + $0x68] sm:$0xff] %v1917
          %1950 = vst [vmem:[%s500 + $0x70] sm:$0xff] %v1918
          %1951 = vst [vmem:[%s500 + $0x78] sm:$0xff] %v1919
          %1952 = vst [vmem:[%s500 + $0x80] sm:$0xff] %v1920
          %1953 = vst [vmem:[%s500 + $0x88] sm:$0xff] %v1921
          %1954 = vst [vmem:[%s500 + $0x90] sm:$0xff] %v1922
          %1955 = vst [vmem:[%s500 + $0x98] sm:$0xff] %v1923
          %1956 = vst [vmem:[%s500 + $0xa0] sm:$0xff] %v1924
          %1957 = vst [vmem:[%s500 + $0xa8] sm:$0xff] %v1925
          %1958 = vst [vmem:[%s500 + $0xb0] sm:$0xff] %v1926
          %1959 = vst [vmem:[%s500 + $0xb8] sm:$0xff] %v1927
          %1960 = vst [vmem:[%s500 + $0xc0] sm:$0xff] %v1928
          %1961 = vst [vmem:[%s500 + $0xc8] sm:$0xff] %v1929
          %1962 = vst [vmem:[%s500 + $0xd0] sm:$0xff] %v1930
          %1963 = vst [vmem:[%s500 + $0xd8] sm:$0xff] %v1931
          %1964 = vst [vmem:[%s500 + $0xe0] sm:$0xff] %v1932
          %1965 = vst [vmem:[%s500 + $0xe8] sm:$0xff] %v1933
          %1966 = vst [vmem:[%s500 + $0xf0] sm:$0xff] %v1934
          %1967 = vst [vmem:[%s500 + $0xf8] sm:$0xff] %v1935
        $region94: #{ngcf_conv.1} parent=81 // pred_fallthru
          _
        %s1968 = smul.u32 32, %s22
        %p1969 = scmp.lt.s32.totalorder %s1968, 63
        %s1970 = scalar_select %p1969, %s1968, 63
        %s1971 = smul.addr %s1970, 8
        %s1972 = scalar_lea.vmem %s7, %s1971
        // Predicated region
        $region95: #{ngcf_conv.1} parent=81 // pred_check
          %p1973 = pneg %p212
        $region96: #{ngcf_conv.1} parent=81 // pred_check_branch
          %1975 = sbr.rel (%p1973) target = $region98
        $region97: #{ngcf_conv.1} parent=81 // pred_region
          %s1976 = smul.u32 32, %s22
        $region98: #{ngcf_conv.1} parent=81 // pred_fallthru
          _
      $region82: #{ngcf_conv.1} parent=5 // pred_fallthru
        _
      %p1977 = scmp.le.s32.totalorder 2, %s13
      // Predicated region
      $region99: #{ngcf_conv.1} parent=5 // pred_check
        %p1978 = pneg %p1977
      $region100: #{ngcf_conv.1} parent=5 // pred_check_branch
        %1980 = sbr.rel (%p1978) target = $region102
      $region101: #{ngcf_conv.1} parent=5 // pred_region
        %s1981 = ssub.s32 %s13, 2
        // Predicated region
        $region103: #{ngcf_conv.1} parent=101 // pred_check
          %p1982 = pneg %p218
        $region104: #{ngcf_conv.1} parent=101 // pred_check_branch
          %1984 = sbr.rel (%p1982) target = $region106
        $region105: #{ngcf_conv.1} parent=101 // pred_region
          %s1985 = smul.u32 32, %s24
          %p1986 = scmp.lt.s32.totalorder %s1985, 63
          %s1987 = scalar_select %p1986, %s1985, 63
          %s1988 = smul.addr %s1987, 8
          %s1989 = scalar_lea.vmem %s7, %s1988
        $region106: #{ngcf_conv.1} parent=101 // pred_fallthru
          _
      $region102: #{ngcf_conv.1} parent=5 // pred_fallthru
        _
    $region6: #{ngcf_conv.1} parent=1 // loop_footer
      %s17 = sadd.s32 1, %s13
    $region7: #{ngcf_conv.1} parent=1 // loop_footer_branch
      %12 = sbr.rel target = $region3
    $region8: #{ngcf_conv.1} parent=1 // loop_exit
      _

</llo_original>
